<compile_context>
chip_gen: v5e
topology: v5e:2x2
jax: 0.10.0
libtpu: 0.0.40
codegen_flags: <defaults>
</compile_context>

<pallas_src>
import math
from functools import partial

import jax
import jax.numpy as jnp
import numpy as np
from jax.experimental import pallas as pl
from jax.experimental.pallas import tpu as pltpu

LN_EPS = 1e-5   # PyTorch nn.LayerNorm default
GP = 128        # per-gate lane pitch (one full lane tile per gate)
HP = 128        # padded hidden width for h and the Wh contraction dim
BT = 8          # batch tile (one f32 sublane tile)


def gru_classifier_kernel(idx_ref, gates_ref, head_ref, out_ref, gx_ref,
                          *, S: int, Vp: int, E: int, H: int, C: int):
    NB = S * BT

    # ---- one-hot embedding gather on the MXU (replaces XLA gather) ----
    ids = idx_ref[...]                                               # [NB, 1] int32
    iota = jax.lax.broadcasted_iota(jnp.int32, (NB, Vp), 1)
    onehot = (iota == ids).astype(jnp.float32)                       # [NB, Vp]
    emb = head_ref[0:Vp, 0:E]                                        # [Vp, E]
    x = jnp.dot(onehot, emb, preferred_element_type=jnp.float32)     # [NB, E]

    # ---- LayerNorm over E (affine folded into wi/bi at prep time) ----
    mu = jnp.mean(x, axis=-1, keepdims=True)
    var = jnp.mean((x - mu) ** 2, axis=-1, keepdims=True)
    xn = (x - mu) * jax.lax.rsqrt(var + LN_EPS)

    # ---- fused input->hidden gates for ALL timesteps, one MXU matmul ----
    wi = gates_ref[0:E, :]                                           # [E, 3*GP]
    bi = gates_ref[E + HP:E + HP + 1, :]                             # [1, 3*GP]
    gx_ref[...] = jnp.dot(xn, wi, preferred_element_type=jnp.float32) + bi

    # ---- hoisted loop invariants ----
    wh = gates_ref[E:E + HP, :]                                      # [HP, 3*GP]
    bh = jnp.broadcast_to(gates_ref[E + HP + 8:E + HP + 9, :], (BT, 3 * GP))

    # ---- GRU recurrence (single layer, unidirectional), fully unrolled ----
    # TODO(synk): switch to lax.fori_loop(..., unroll=True) if S grows beyond ~32.
    h = jnp.zeros((BT, HP), jnp.float32)                             # pad lanes stay 0
    for t in range(S):
        g = gx_ref[t * BT:(t + 1) * BT, :]                           # [BT, 3*GP] aligned slice
        gh = jnp.dot(h, wh, preferred_element_type=jnp.float32) + bh
        rz = jax.nn.sigmoid(g[:, 0:2 * GP] + gh[:, 0:2 * GP])        # one EUP pass for r|z
        r = rz[:, 0:GP]
        z = rz[:, GP:2 * GP]
        n = jnp.tanh(g[:, 2 * GP:3 * GP] + r * gh[:, 2 * GP:3 * GP])  # lane-aligned vregs
        h = (1.0 - z) * n + z * h

    # ---- LayerNorm over H + classifier head ----
    hh = h[:, 0:H]
    mu2 = jnp.mean(hh, axis=-1, keepdims=True)
    var2 = jnp.mean((hh - mu2) ** 2, axis=-1, keepdims=True)
    hn = (hh - mu2) * jax.lax.rsqrt(var2 + LN_EPS)
    hn = hn * head_ref[Vp:Vp + 1, 0:H] + head_ref[Vp + 8:Vp + 9, 0:H]
    wfc = head_ref[Vp + 16:Vp + 16 + H, :]                           # [H, W2], cols >= C are 0
    bfc = head_ref[Vp + 16 + H:Vp + 17 + H, :]                       # [1, W2]
    logits = jnp.dot(hn, wfc, preferred_element_type=jnp.float32) + bfc
    out_ref[...] = logits[:, 0:C]


def names_classifier_gru_forward(indices, gates, head, dims):
    """indices: [B, S] int32.  gates/head: prepared slabs.  Returns logits [B, C]."""
    B, S = indices.shape
    Vp, E, H, C = dims["Vp"], dims["E"], dims["H"], dims["C"]
    assert B % BT == 0, "batch must be a multiple of 8 (one f32 sublane tile)"
    NBT = B // BT

    # Tile/time-major flattening of token ids: flat row i*(S*BT)+t*BT+b = indices[i*BT+b, t].
    idx = jnp.transpose(indices.reshape(NBT, BT, S), (0, 2, 1)).reshape(B * S, 1)
    idx = idx.astype(jnp.int32)

    kernel = partial(gru_classifier_kernel, S=S, Vp=Vp, E=E, H=H, C=C)
    return pl.pallas_call(
        kernel,
        out_shape=jax.ShapeDtypeStruct((B, C), jnp.float32),
        grid=(NBT,),
        in_specs=[
            pl.BlockSpec((S * BT, 1), lambda i: (i, 0)),       # token ids per batch tile
            pl.BlockSpec(gates.shape, lambda i: (0, 0)),       # Wi|Wh|bi|bh slab (resident)
            pl.BlockSpec(head.shape, lambda i: (0, 0)),        # emb|ln2|fc slab (resident)
        ],
        out_specs=pl.BlockSpec((BT, C), lambda i: (i, 0)),
        scratch_shapes=[pltpu.VMEM((S * BT, 3 * GP), jnp.float32)],
        compiler_params=pltpu.CompilerParams(dimension_semantics=("parallel",)),
    )(idx, gates, head)


def prepare_params(p):
    """One-time parameter prep: LN1 fold, gate fusion, 128-lane padding, slab packing."""
    V, E = p["emb"].shape
    H = p["Whr"].shape[0]
    C = p["Wfc"].shape[1]
    assert E % 8 == 0 and H % 8 == 0 and H <= GP
    Vp = ((V + 7) // 8) * 8
    W2 = max(E, H, C)

    g1 = p["ln1g"].reshape(E)
    b1 = p["ln1b"].reshape(1, E)

    def fold_ln1(W, b):
        # (norm(x)*g1 + b1) @ W + b == norm(x) @ (g1[:,None]*W) + (b + b1 @ W)
        return g1[:, None] * W, b + b1 @ W

    Wir, br = fold_ln1(p["Wir"], p["br"])
    Wiz, bz = fold_ln1(p["Wiz"], p["bz"])
    Win, bn = fold_ln1(p["Win"], p["bin"])

    def padc(a, width):
        return jnp.pad(a, ((0, 0), (0, width - a.shape[1])))

    def padr(a, rows):
        return jnp.pad(a, ((0, rows - a.shape[0]), (0, 0)))

    wi = jnp.concatenate([padc(Wir, GP), padc(Wiz, GP), padc(Win, GP)], axis=1)  # [E, 3GP]
    bi = jnp.concatenate([padc(br, GP), padc(bz, GP), padc(bn, GP)], axis=1)      # [1, 3GP]

    def pad_wh(W):  # [H,H] -> [HP,GP], zero pad rows/cols
        return jnp.pad(W, ((0, HP - H), (0, GP - H)))

    wh = jnp.concatenate([pad_wh(p["Whr"]), pad_wh(p["Whz"]), pad_wh(p["Whn"])], axis=1)
    zero_gp = jnp.zeros((1, GP), jnp.float32)
    bh = jnp.concatenate([zero_gp, zero_gp, padc(p["bhn"], GP)], axis=1)          # [1, 3GP]

    # gates slab: rows [0:E]=wi, [E:E+HP]=wh, [E+HP]=bi, [E+HP+8]=bh
    gates = jnp.concatenate([wi, wh, padr(bi, 8), padr(bh, 8)], axis=0)           # [E+HP+16, 3GP]

    # head slab (width W2): rows [0:Vp]=emb, [Vp]=ln2g, [Vp+8]=ln2b,
    # [Vp+16:Vp+16+H]=wfc, [Vp+16+H]=bfc
    head = jnp.concatenate([
        padr(padc(p["emb"], W2), Vp),
        padr(padc(p["ln2g"], W2), 8),
        padr(padc(p["ln2b"], W2), 8),
        padc(p["Wfc"], W2),
        padr(padc(p["bfc"], W2), 8),
    ], axis=0)

    dims = dict(V=V, Vp=Vp, E=E, H=H, C=C)
    return {"gates": gates, "head": head, "dims": dims}


def init_params(key, V, E, H, C):
    ks = jax.random.split(key, 20)
    kH = 1.0 / math.sqrt(H)

    def u(k, shape, bound):
        return jax.random.uniform(k, shape, jnp.float32, -bound, bound)

    emb = jax.random.normal(ks[0], (V, E), jnp.float32)
    emb = emb.at[0].set(0.0)  # padding_idx=0

    return {
        "emb": emb,
        # LayerNorm params randomized (instead of default 1/0) to exercise the folds.
        "ln1g": 1.0 + 0.1 * jax.random.normal(ks[13], (1, E), jnp.float32),
        "ln1b": 0.1 * jax.random.normal(ks[14], (1, E), jnp.float32),
        "ln2g": 1.0 + 0.1 * jax.random.normal(ks[15], (1, H), jnp.float32),
        "ln2b": 0.1 * jax.random.normal(ks[16], (1, H), jnp.float32),
        # GRU input-to-hidden (stored as [E, H] for x @ W)
        "Wir": u(ks[1], (E, H), kH),
        "Wiz": u(ks[2], (E, H), kH),
        "Win": u(ks[3], (E, H), kH),
        # GRU hidden-to-hidden (stored as [H, H] for h @ W)
        "Whr": u(ks[4], (H, H), kH),
        "Whz": u(ks[5], (H, H), kH),
        "Whn": u(ks[6], (H, H), kH),
        # biases: br = b_ir + b_hr, bz = b_iz + b_hz ; b_in and b_hn kept
        # separate because r multiplies only the hidden-side new-gate bias.
        "br": u(ks[7], (1, H), kH),
        "bz": u(ks[8], (1, H), kH),
        "bin": u(ks[9], (1, H), kH),
        "bhn": u(ks[10], (1, H), kH),
        "Wfc": u(ks[11], (H, C), kH),
        "bfc": u(ks[12], (1, C), kH),
    }


def reference_forward(indices, p):
    """Pure-JAX reference reproducing the PyTorch forward semantics."""
    emb = p["emb"][indices]                              # [B, S, E]
    mu = emb.mean(-1, keepdims=True)
    var = ((emb - mu) ** 2).mean(-1, keepdims=True)
    xn = (emb - mu) / jnp.sqrt(var + LN_EPS) * p["ln1g"][0] + p["ln1b"][0]

    B, S, E = emb.shape
    H = p["Whr"].shape[0]
    h = jnp.zeros((B, H), jnp.float32)
    for t in range(S):
        x_t = xn[:, t, :]
        r = jax.nn.sigmoid(x_t @ p["Wir"] + h @ p["Whr"] + p["br"][0])
        z = jax.nn.sigmoid(x_t @ p["Wiz"] + h @ p["Whz"] + p["bz"][0])
        n = jnp.tanh(x_t @ p["Win"] + p["bin"][0] + r * (h @ p["Whn"] + p["bhn"][0]))
        h = (1.0 - z) * n + z * h

    mu2 = h.mean(-1, keepdims=True)
    var2 = ((h - mu2) ** 2).mean(-1, keepdims=True)
    hn2 = (h - mu2) / jnp.sqrt(var2 + LN_EPS) * p["ln2g"][0] + p["ln2b"][0]
    return hn2 @ p["Wfc"] + p["bfc"][0]


if __name__ == "__main__":
    # Small shapes consistent with the module: vocab V, classes C, embed E,
    # hidden H, single unidirectional GRU layer.
    B, S = 8, 8
    V, E, H, C = 32, 16, 32, 10

    key = jax.random.PRNGKey(0)
    kp, ki = jax.random.split(key)
    params = init_params(kp, V, E, H, C)
    indices = jax.random.randint(ki, (B, S), 0, V, dtype=jnp.int32)

    prep = prepare_params(params)          # one-time fusion/padding (not per call)
    dims = prep["dims"]
    fwd = jax.jit(lambda idx, g, h: names_classifier_gru_forward(idx, g, h, dims))

    logits = jax.block_until_ready(fwd(indices, prep["gates"], prep["head"]))

    ref = reference_forward(indices, params)
    np.testing.assert_allclose(np.asarray(logits), np.asarray(ref),
                               rtol=1e-3, atol=1e-3)
    assert logits.shape == (B, C)
    print("KERNEL_OK")
</pallas_src>

<mosaic_0001>
module attributes {stable_mosaic.version = 11 : i64} {
  func.func @gru_classifier_kernel(%arg0: i32, %arg1: memref<64x1xi32, #tpu.memory_space<vmem>>, %arg2: memref<160x384xf32, #tpu.memory_space<vmem>>, %arg3: memref<88x32xf32, #tpu.memory_space<vmem>>, %arg4: memref<8x10xf32, #tpu.memory_space<vmem>>, %arg5: memref<64x384xf32, #tpu.memory_space<vmem>>) attributes {dimension_semantics = [#tpu.dimension_semantics<parallel>], iteration_bounds = array<i64: 1>, scalar_prefetch = 0 : i64, scratch_operands = 1 : i64, tpu.core_type = #tpu.core_type<tc>, window_params = [{transform_indices = @transform_0, window_bounds = array<i64: 64, 1>}, {pipeline_mode = #tpu.pipeline_mode<synchronous>, transform_indices = @transform_1, window_bounds = array<i64: 160, 384>}, {pipeline_mode = #tpu.pipeline_mode<synchronous>, transform_indices = @transform_2, window_bounds = array<i64: 88, 32>}, {transform_indices = @transform_3, window_bounds = array<i64: 8, 10>}]} {
    %c0 = arith.constant 0 : index
    %c0_0 = arith.constant 0 : index
    %0 = vector.load %arg1[%c0, %c0_0] : memref<64x1xi32, #tpu.memory_space<vmem>>, vector<64x1xi32>
    %1 = tpu.iota {dimensions = array<i32: 1>} : vector<64x32xi32>
    %2 = vector.broadcast %0 : vector<64x1xi32> to vector<64x32xi32>
    %3 = arith.cmpi eq, %1, %2 : vector<64x32xi32>
    %4 = arith.extui %3 : vector<64x32xi1> to vector<64x32xi32>
    %5 = arith.sitofp %4 : vector<64x32xi32> to vector<64x32xf32>
    %c0_1 = arith.constant 0 : index
    %c0_2 = arith.constant 0 : index
    %6 = vector.load %arg3[%c0_1, %c0_2] : memref<88x32xf32, #tpu.memory_space<vmem>>, vector<32x16xf32>
    %cst = arith.constant dense<0.000000e+00> : vector<64x16xf32>
    %7 = tpu.matmul %5, %6, %cst {dimension_numbers = #tpu.dot_dimension_numbers<[1], [0], [0], [1], [0, 0, 1, 1], [], []>} : vector<64x32xf32>, vector<32x16xf32>, vector<64x16xf32> -> vector<64x16xf32>
    %cst_3 = arith.constant dense<0.000000e+00> : vector<64xf32>
    %8 = vector.multi_reduction <add>, %7, %cst_3 [1] : vector<64x16xf32> to vector<64xf32>
    %9 = vector.shape_cast %8 : vector<64xf32> to vector<64x1xf32>
    %cst_4 = arith.constant 1.600000e+01 : f32
    %10 = vector.broadcast %cst_4 : f32 to vector<64x1xf32>
    %11 = arith.divf %9, %10 : vector<64x1xf32>
    %12 = vector.broadcast %11 : vector<64x1xf32> to vector<64x16xf32>
    %13 = arith.subf %7, %12 : vector<64x16xf32>
    %14 = arith.mulf %13, %13 : vector<64x16xf32>
    %cst_5 = arith.constant dense<0.000000e+00> : vector<64xf32>
    %15 = vector.multi_reduction <add>, %14, %cst_5 [1] : vector<64x16xf32> to vector<64xf32>
    %16 = vector.shape_cast %15 : vector<64xf32> to vector<64x1xf32>
    %cst_6 = arith.constant 1.600000e+01 : f32
    %17 = vector.broadcast %cst_6 : f32 to vector<64x1xf32>
    %18 = arith.divf %16, %17 : vector<64x1xf32>
    %19 = vector.broadcast %11 : vector<64x1xf32> to vector<64x16xf32>
    %20 = arith.subf %7, %19 : vector<64x16xf32>
    %cst_7 = arith.constant 9.99999974E-6 : f32
    %21 = vector.broadcast %cst_7 : f32 to vector<64x1xf32>
    %22 = arith.addf %18, %21 : vector<64x1xf32>
    %23 = math.rsqrt %22 : vector<64x1xf32>
    %24 = vector.broadcast %23 : vector<64x1xf32> to vector<64x16xf32>
    %25 = arith.mulf %20, %24 : vector<64x16xf32>
    %c0_8 = arith.constant 0 : index
    %c0_9 = arith.constant 0 : index
    %26 = vector.load %arg2[%c0_8, %c0_9] : memref<160x384xf32, #tpu.memory_space<vmem>>, vector<16x384xf32>
    %c144 = arith.constant 144 : index
    %c0_10 = arith.constant 0 : index
    %27 = vector.load %arg2[%c144, %c0_10] : memref<160x384xf32, #tpu.memory_space<vmem>>, vector<1x384xf32>
    %cst_11 = arith.constant dense<0.000000e+00> : vector<64x384xf32>
    %28 = tpu.matmul %25, %26, %cst_11 {dimension_numbers = #tpu.dot_dimension_numbers<[1], [0], [0], [1], [0, 0, 1, 1], [], []>} : vector<64x16xf32>, vector<16x384xf32>, vector<64x384xf32> -> vector<64x384xf32>
    %29 = vector.broadcast %27 : vector<1x384xf32> to vector<64x384xf32>
    %30 = arith.addf %28, %29 : vector<64x384xf32>
    %c0_12 = arith.constant 0 : index
    %c0_13 = arith.constant 0 : index
    %31 = vector.load %arg5[%c0_12, %c0_13] : memref<64x384xf32, #tpu.memory_space<vmem>>, vector<64x384xf32>
    tpu.vector_store %arg5[%c0_12, %c0_13], %30 {strides = array<i32>} : memref<64x384xf32, #tpu.memory_space<vmem>>, vector<64x384xf32>,
    %c16 = arith.constant 16 : index
    %c0_14 = arith.constant 0 : index
    %32 = vector.load %arg2[%c16, %c0_14] : memref<160x384xf32, #tpu.memory_space<vmem>>, vector<128x384xf32>
    %c152 = arith.constant 152 : index
    %c0_15 = arith.constant 0 : index
    %33 = vector.load %arg2[%c152, %c0_15] : memref<160x384xf32, #tpu.memory_space<vmem>>, vector<1x384xf32>
    %34 = vector.shape_cast %33 : vector<1x384xf32> to vector<1x384xf32>
    %35 = vector.broadcast %34 : vector<1x384xf32> to vector<8x384xf32>
    %cst_16 = arith.constant 0.000000e+00 : f32
    %36 = vector.broadcast %cst_16 : f32 to vector<8x128xf32>
    %c0_17 = arith.constant 0 : index
    %c0_18 = arith.constant 0 : index
    %37 = vector.load %arg5[%c0_17, %c0_18] : memref<64x384xf32, #tpu.memory_space<vmem>>, vector<8x384xf32>
    %cst_19 = arith.constant dense<0.000000e+00> : vector<8x384xf32>
    %38 = tpu.matmul %36, %32, %cst_19 {dimension_numbers = #tpu.dot_dimension_numbers<[1], [0], [0], [1], [0, 0, 1, 1], [], []>} : vector<8x128xf32>, vector<128x384xf32>, vector<8x384xf32> -> vector<8x384xf32>
    %39 = arith.addf %38, %35 : vector<8x384xf32>
    %40 = vector.extract_strided_slice %37 {offsets = [0, 0], sizes = [8, 256], strides = [1, 1]} : vector<8x384xf32> to vector<8x256xf32>
    %41 = vector.extract_strided_slice %39 {offsets = [0, 0], sizes = [8, 256], strides = [1, 1]} : vector<8x384xf32> to vector<8x256xf32>
    %42 = arith.addf %40, %41 : vector<8x256xf32>
    %43 = arith.negf %42 : vector<8x256xf32>
    %44 = math.exp %43 : vector<8x256xf32>
    %cst_20 = arith.constant 1.000000e+00 : f32
    %45 = vector.broadcast %cst_20 : f32 to vector<8x256xf32>
    %46 = arith.addf %45, %44 : vector<8x256xf32>
    %47 = arith.divf %45, %46 : vector<8x256xf32>
    %48 = vector.extract_strided_slice %47 {offsets = [0, 0], sizes = [8, 128], strides = [1, 1]} : vector<8x256xf32> to vector<8x128xf32>
    %49 = vector.extract_strided_slice %47 {offsets = [0, 128], sizes = [8, 128], strides = [1, 1]} : vector<8x256xf32> to vector<8x128xf32>
    %50 = vector.extract_strided_slice %37 {offsets = [0, 256], sizes = [8, 128], strides = [1, 1]} : vector<8x384xf32> to vector<8x128xf32>
    %51 = vector.extract_strided_slice %39 {offsets = [0, 256], sizes = [8, 128], strides = [1, 1]} : vector<8x384xf32> to vector<8x128xf32>
    %52 = arith.mulf %48, %51 : vector<8x128xf32>
    %53 = arith.addf %50, %52 : vector<8x128xf32>
    %54 = math.tanh %53 : vector<8x128xf32>
    %cst_21 = arith.constant 1.000000e+00 : f32
    %55 = vector.broadcast %cst_21 : f32 to vector<8x128xf32>
    %56 = arith.subf %55, %49 : vector<8x128xf32>
    %57 = arith.mulf %56, %54 : vector<8x128xf32>
    %58 = arith.mulf %49, %36 : vector<8x128xf32>
    %59 = arith.addf %57, %58 : vector<8x128xf32>
    %c8 = arith.constant 8 : index
    %c0_22 = arith.constant 0 : index
    %60 = vector.load %arg5[%c8, %c0_22] : memref<64x384xf32, #tpu.memory_space<vmem>>, vector<8x384xf32>
    %cst_23 = arith.constant dense<0.000000e+00> : vector<8x384xf32>
    %61 = tpu.matmul %59, %32, %cst_23 {dimension_numbers = #tpu.dot_dimension_numbers<[1], [0], [0], [1], [0, 0, 1, 1], [], []>} : vector<8x128xf32>, vector<128x384xf32>, vector<8x384xf32> -> vector<8x384xf32>
    %62 = arith.addf %61, %35 : vector<8x384xf32>
    %63 = vector.extract_strided_slice %60 {offsets = [0, 0], sizes = [8, 256], strides = [1, 1]} : vector<8x384xf32> to vector<8x256xf32>
    %64 = vector.extract_strided_slice %62 {offsets = [0, 0], sizes = [8, 256], strides = [1, 1]} : vector<8x384xf32> to vector<8x256xf32>
    %65 = arith.addf %63, %64 : vector<8x256xf32>
    %66 = arith.negf %65 : vector<8x256xf32>
    %67 = math.exp %66 : vector<8x256xf32>
    %cst_24 = arith.constant 1.000000e+00 : f32
    %68 = vector.broadcast %cst_24 : f32 to vector<8x256xf32>
    %69 = arith.addf %68, %67 : vector<8x256xf32>
    %70 = arith.divf %68, %69 : vector<8x256xf32>
    %71 = vector.extract_strided_slice %70 {offsets = [0, 0], sizes = [8, 128], strides = [1, 1]} : vector<8x256xf32> to vector<8x128xf32>
    %72 = vector.extract_strided_slice %70 {offsets = [0, 128], sizes = [8, 128], strides = [1, 1]} : vector<8x256xf32> to vector<8x128xf32>
    %73 = vector.extract_strided_slice %60 {offsets = [0, 256], sizes = [8, 128], strides = [1, 1]} : vector<8x384xf32> to vector<8x128xf32>
    %74 = vector.extract_strided_slice %62 {offsets = [0, 256], sizes = [8, 128], strides = [1, 1]} : vector<8x384xf32> to vector<8x128xf32>
    %75 = arith.mulf %71, %74 : vector<8x128xf32>
    %76 = arith.addf %73, %75 : vector<8x128xf32>
    %77 = math.tanh %76 : vector<8x128xf32>
    %cst_25 = arith.constant 1.000000e+00 : f32
    %78 = vector.broadcast %cst_25 : f32 to vector<8x128xf32>
    %79 = arith.subf %78, %72 : vector<8x128xf32>
    %80 = arith.mulf %79, %77 : vector<8x128xf32>
    %81 = arith.mulf %72, %59 : vector<8x128xf32>
    %82 = arith.addf %80, %81 : vector<8x128xf32>
    %c16_26 = arith.constant 16 : index
    %c0_27 = arith.constant 0 : index
    %83 = vector.load %arg5[%c16_26, %c0_27] : memref<64x384xf32, #tpu.memory_space<vmem>>, vector<8x384xf32>
    %cst_28 = arith.constant dense<0.000000e+00> : vector<8x384xf32>
    %84 = tpu.matmul %82, %32, %cst_28 {dimension_numbers = #tpu.dot_dimension_numbers<[1], [0], [0], [1], [0, 0, 1, 1], [], []>} : vector<8x128xf32>, vector<128x384xf32>, vector<8x384xf32> -> vector<8x384xf32>
    %85 = arith.addf %84, %35 : vector<8x384xf32>
    %86 = vector.extract_strided_slice %83 {offsets = [0, 0], sizes = [8, 256], strides = [1, 1]} : vector<8x384xf32> to vector<8x256xf32>
    %87 = vector.extract_strided_slice %85 {offsets = [0, 0], sizes = [8, 256], strides = [1, 1]} : vector<8x384xf32> to vector<8x256xf32>
    %88 = arith.addf %86, %87 : vector<8x256xf32>
    %89 = arith.negf %88 : vector<8x256xf32>
    %90 = math.exp %89 : vector<8x256xf32>
    %cst_29 = arith.constant 1.000000e+00 : f32
    %91 = vector.broadcast %cst_29 : f32 to vector<8x256xf32>
    %92 = arith.addf %91, %90 : vector<8x256xf32>
    %93 = arith.divf %91, %92 : vector<8x256xf32>
    %94 = vector.extract_strided_slice %93 {offsets = [0, 0], sizes = [8, 128], strides = [1, 1]} : vector<8x256xf32> to vector<8x128xf32>
    %95 = vector.extract_strided_slice %93 {offsets = [0, 128], sizes = [8, 128], strides = [1, 1]} : vector<8x256xf32> to vector<8x128xf32>
    %96 = vector.extract_strided_slice %83 {offsets = [0, 256], sizes = [8, 128], strides = [1, 1]} : vector<8x384xf32> to vector<8x128xf32>
    %97 = vector.extract_strided_slice %85 {offsets = [0, 256], sizes = [8, 128], strides = [1, 1]} : vector<8x384xf32> to vector<8x128xf32>
    %98 = arith.mulf %94, %97 : vector<8x128xf32>
    %99 = arith.addf %96, %98 : vector<8x128xf32>
    %100 = math.tanh %99 : vector<8x128xf32>
    %cst_30 = arith.constant 1.000000e+00 : f32
    %101 = vector.broadcast %cst_30 : f32 to vector<8x128xf32>
    %102 = arith.subf %101, %95 : vector<8x128xf32>
    %103 = arith.mulf %102, %100 : vector<8x128xf32>
    %104 = arith.mulf %95, %82 : vector<8x128xf32>
    %105 = arith.addf %103, %104 : vector<8x128xf32>
    %c24 = arith.constant 24 : index
    %c0_31 = arith.constant 0 : index
    %106 = vector.load %arg5[%c24, %c0_31] : memref<64x384xf32, #tpu.memory_space<vmem>>, vector<8x384xf32>
    %cst_32 = arith.constant dense<0.000000e+00> : vector<8x384xf32>
    %107 = tpu.matmul %105, %32, %cst_32 {dimension_numbers = #tpu.dot_dimension_numbers<[1], [0], [0], [1], [0, 0, 1, 1], [], []>} : vector<8x128xf32>, vector<128x384xf32>, vector<8x384xf32> -> vector<8x384xf32>
    %108 = arith.addf %107, %35 : vector<8x384xf32>
    %109 = vector.extract_strided_slice %106 {offsets = [0, 0], sizes = [8, 256], strides = [1, 1]} : vector<8x384xf32> to vector<8x256xf32>
    %110 = vector.extract_strided_slice %108 {offsets = [0, 0], sizes = [8, 256], strides = [1, 1]} : vector<8x384xf32> to vector<8x256xf32>
    %111 = arith.addf %109, %110 : vector<8x256xf32>
    %112 = arith.negf %111 : vector<8x256xf32>
    %113 = math.exp %112 : vector<8x256xf32>
    %cst_33 = arith.constant 1.000000e+00 : f32
    %114 = vector.broadcast %cst_33 : f32 to vector<8x256xf32>
    %115 = arith.addf %114, %113 : vector<8x256xf32>
    %116 = arith.divf %114, %115 : vector<8x256xf32>
    %117 = vector.extract_strided_slice %116 {offsets = [0, 0], sizes = [8, 128], strides = [1, 1]} : vector<8x256xf32> to vector<8x128xf32>
    %118 = vector.extract_strided_slice %116 {offsets = [0, 128], sizes = [8, 128], strides = [1, 1]} : vector<8x256xf32> to vector<8x128xf32>
    %119 = vector.extract_strided_slice %106 {offsets = [0, 256], sizes = [8, 128], strides = [1, 1]} : vector<8x384xf32> to vector<8x128xf32>
    %120 = vector.extract_strided_slice %108 {offsets = [0, 256], sizes = [8, 128], strides = [1, 1]} : vector<8x384xf32> to vector<8x128xf32>
    %121 = arith.mulf %117, %120 : vector<8x128xf32>
    %122 = arith.addf %119, %121 : vector<8x128xf32>
    %123 = math.tanh %122 : vector<8x128xf32>
    %cst_34 = arith.constant 1.000000e+00 : f32
    %124 = vector.broadcast %cst_34 : f32 to vector<8x128xf32>
    %125 = arith.subf %124, %118 : vector<8x128xf32>
    %126 = arith.mulf %125, %123 : vector<8x128xf32>
    %127 = arith.mulf %118, %105 : vector<8x128xf32>
    %128 = arith.addf %126, %127 : vector<8x128xf32>
    %c32 = arith.constant 32 : index
    %c0_35 = arith.constant 0 : index
    %129 = vector.load %arg5[%c32, %c0_35] : memref<64x384xf32, #tpu.memory_space<vmem>>, vector<8x384xf32>
    %cst_36 = arith.constant dense<0.000000e+00> : vector<8x384xf32>
    %130 = tpu.matmul %128, %32, %cst_36 {dimension_numbers = #tpu.dot_dimension_numbers<[1], [0], [0], [1], [0, 0, 1, 1], [], []>} : vector<8x128xf32>, vector<128x384xf32>, vector<8x384xf32> -> vector<8x384xf32>
    %131 = arith.addf %130, %35 : vector<8x384xf32>
    %132 = vector.extract_strided_slice %129 {offsets = [0, 0], sizes = [8, 256], strides = [1, 1]} : vector<8x384xf32> to vector<8x256xf32>
    %133 = vector.extract_strided_slice %131 {offsets = [0, 0], sizes = [8, 256], strides = [1, 1]} : vector<8x384xf32> to vector<8x256xf32>
    %134 = arith.addf %132, %133 : vector<8x256xf32>
    %135 = arith.negf %134 : vector<8x256xf32>
    %136 = math.exp %135 : vector<8x256xf32>
    %cst_37 = arith.constant 1.000000e+00 : f32
    %137 = vector.broadcast %cst_37 : f32 to vector<8x256xf32>
    %138 = arith.addf %137, %136 : vector<8x256xf32>
    %139 = arith.divf %137, %138 : vector<8x256xf32>
    %140 = vector.extract_strided_slice %139 {offsets = [0, 0], sizes = [8, 128], strides = [1, 1]} : vector<8x256xf32> to vector<8x128xf32>
    %141 = vector.extract_strided_slice %139 {offsets = [0, 128], sizes = [8, 128], strides = [1, 1]} : vector<8x256xf32> to vector<8x128xf32>
    %142 = vector.extract_strided_slice %129 {offsets = [0, 256], sizes = [8, 128], strides = [1, 1]} : vector<8x384xf32> to vector<8x128xf32>
    %143 = vector.extract_strided_slice %131 {offsets = [0, 256], sizes = [8, 128], strides = [1, 1]} : vector<8x384xf32> to vector<8x128xf32>
    %144 = arith.mulf %140, %143 : vector<8x128xf32>
    %145 = arith.addf %142, %144 : vector<8x128xf32>
    %146 = math.tanh %145 : vector<8x128xf32>
    %cst_38 = arith.constant 1.000000e+00 : f32
    %147 = vector.broadcast %cst_38 : f32 to vector<8x128xf32>
    %148 = arith.subf %147, %141 : vector<8x128xf32>
    %149 = arith.mulf %148, %146 : vector<8x128xf32>
    %150 = arith.mulf %141, %128 : vector<8x128xf32>
    %151 = arith.addf %149, %150 : vector<8x128xf32>
    %c40 = arith.constant 40 : index
    %c0_39 = arith.constant 0 : index
    %152 = vector.load %arg5[%c40, %c0_39] : memref<64x384xf32, #tpu.memory_space<vmem>>, vector<8x384xf32>
    %cst_40 = arith.constant dense<0.000000e+00> : vector<8x384xf32>
    %153 = tpu.matmul %151, %32, %cst_40 {dimension_numbers = #tpu.dot_dimension_numbers<[1], [0], [0], [1], [0, 0, 1, 1], [], []>} : vector<8x128xf32>, vector<128x384xf32>, vector<8x384xf32> -> vector<8x384xf32>
    %154 = arith.addf %153, %35 : vector<8x384xf32>
    %155 = vector.extract_strided_slice %152 {offsets = [0, 0], sizes = [8, 256], strides = [1, 1]} : vector<8x384xf32> to vector<8x256xf32>
    %156 = vector.extract_strided_slice %154 {offsets = [0, 0], sizes = [8, 256], strides = [1, 1]} : vector<8x384xf32> to vector<8x256xf32>
    %157 = arith.addf %155, %156 : vector<8x256xf32>
    %158 = arith.negf %157 : vector<8x256xf32>
    %159 = math.exp %158 : vector<8x256xf32>
    %cst_41 = arith.constant 1.000000e+00 : f32
    %160 = vector.broadcast %cst_41 : f32 to vector<8x256xf32>
    %161 = arith.addf %160, %159 : vector<8x256xf32>
    %162 = arith.divf %160, %161 : vector<8x256xf32>
    %163 = vector.extract_strided_slice %162 {offsets = [0, 0], sizes = [8, 128], strides = [1, 1]} : vector<8x256xf32> to vector<8x128xf32>
    %164 = vector.extract_strided_slice %162 {offsets = [0, 128], sizes = [8, 128], strides = [1, 1]} : vector<8x256xf32> to vector<8x128xf32>
    %165 = vector.extract_strided_slice %152 {offsets = [0, 256], sizes = [8, 128], strides = [1, 1]} : vector<8x384xf32> to vector<8x128xf32>
    %166 = vector.extract_strided_slice %154 {offsets = [0, 256], sizes = [8, 128], strides = [1, 1]} : vector<8x384xf32> to vector<8x128xf32>
    %167 = arith.mulf %163, %166 : vector<8x128xf32>
    %168 = arith.addf %165, %167 : vector<8x128xf32>
    %169 = math.tanh %168 : vector<8x128xf32>
    %cst_42 = arith.constant 1.000000e+00 : f32
    %170 = vector.broadcast %cst_42 : f32 to vector<8x128xf32>
    %171 = arith.subf %170, %164 : vector<8x128xf32>
    %172 = arith.mulf %171, %169 : vector<8x128xf32>
    %173 = arith.mulf %164, %151 : vector<8x128xf32>
    %174 = arith.addf %172, %173 : vector<8x128xf32>
    %c48 = arith.constant 48 : index
    %c0_43 = arith.constant 0 : index
    %175 = vector.load %arg5[%c48, %c0_43] : memref<64x384xf32, #tpu.memory_space<vmem>>, vector<8x384xf32>
    %cst_44 = arith.constant dense<0.000000e+00> : vector<8x384xf32>
    %176 = tpu.matmul %174, %32, %cst_44 {dimension_numbers = #tpu.dot_dimension_numbers<[1], [0], [0], [1], [0, 0, 1, 1], [], []>} : vector<8x128xf32>, vector<128x384xf32>, vector<8x384xf32> -> vector<8x384xf32>
    %177 = arith.addf %176, %35 : vector<8x384xf32>
    %178 = vector.extract_strided_slice %175 {offsets = [0, 0], sizes = [8, 256], strides = [1, 1]} : vector<8x384xf32> to vector<8x256xf32>
    %179 = vector.extract_strided_slice %177 {offsets = [0, 0], sizes = [8, 256], strides = [1, 1]} : vector<8x384xf32> to vector<8x256xf32>
    %180 = arith.addf %178, %179 : vector<8x256xf32>
    %181 = arith.negf %180 : vector<8x256xf32>
    %182 = math.exp %181 : vector<8x256xf32>
    %cst_45 = arith.constant 1.000000e+00 : f32
    %183 = vector.broadcast %cst_45 : f32 to vector<8x256xf32>
    %184 = arith.addf %183, %182 : vector<8x256xf32>
    %185 = arith.divf %183, %184 : vector<8x256xf32>
    %186 = vector.extract_strided_slice %185 {offsets = [0, 0], sizes = [8, 128], strides = [1, 1]} : vector<8x256xf32> to vector<8x128xf32>
    %187 = vector.extract_strided_slice %185 {offsets = [0, 128], sizes = [8, 128], strides = [1, 1]} : vector<8x256xf32> to vector<8x128xf32>
    %188 = vector.extract_strided_slice %175 {offsets = [0, 256], sizes = [8, 128], strides = [1, 1]} : vector<8x384xf32> to vector<8x128xf32>
    %189 = vector.extract_strided_slice %177 {offsets = [0, 256], sizes = [8, 128], strides = [1, 1]} : vector<8x384xf32> to vector<8x128xf32>
    %190 = arith.mulf %186, %189 : vector<8x128xf32>
    %191 = arith.addf %188, %190 : vector<8x128xf32>
    %192 = math.tanh %191 : vector<8x128xf32>
    %cst_46 = arith.constant 1.000000e+00 : f32
    %193 = vector.broadcast %cst_46 : f32 to vector<8x128xf32>
    %194 = arith.subf %193, %187 : vector<8x128xf32>
    %195 = arith.mulf %194, %192 : vector<8x128xf32>
    %196 = arith.mulf %187, %174 : vector<8x128xf32>
    %197 = arith.addf %195, %196 : vector<8x128xf32>
    %c56 = arith.constant 56 : index
    %c0_47 = arith.constant 0 : index
    %198 = vector.load %arg5[%c56, %c0_47] : memref<64x384xf32, #tpu.memory_space<vmem>>, vector<8x384xf32>
    %cst_48 = arith.constant dense<0.000000e+00> : vector<8x384xf32>
    %199 = tpu.matmul %197, %32, %cst_48 {dimension_numbers = #tpu.dot_dimension_numbers<[1], [0], [0], [1], [0, 0, 1, 1], [], []>} : vector<8x128xf32>, vector<128x384xf32>, vector<8x384xf32> -> vector<8x384xf32>
    %200 = arith.addf %199, %35 : vector<8x384xf32>
    %201 = vector.extract_strided_slice %198 {offsets = [0, 0], sizes = [8, 256], strides = [1, 1]} : vector<8x384xf32> to vector<8x256xf32>
    %202 = vector.extract_strided_slice %200 {offsets = [0, 0], sizes = [8, 256], strides = [1, 1]} : vector<8x384xf32> to vector<8x256xf32>
    %203 = arith.addf %201, %202 : vector<8x256xf32>
    %204 = arith.negf %203 : vector<8x256xf32>
    %205 = math.exp %204 : vector<8x256xf32>
    %cst_49 = arith.constant 1.000000e+00 : f32
    %206 = vector.broadcast %cst_49 : f32 to vector<8x256xf32>
    %207 = arith.addf %206, %205 : vector<8x256xf32>
    %208 = arith.divf %206, %207 : vector<8x256xf32>
    %209 = vector.extract_strided_slice %208 {offsets = [0, 0], sizes = [8, 128], strides = [1, 1]} : vector<8x256xf32> to vector<8x128xf32>
    %210 = vector.extract_strided_slice %208 {offsets = [0, 128], sizes = [8, 128], strides = [1, 1]} : vector<8x256xf32> to vector<8x128xf32>
    %211 = vector.extract_strided_slice %198 {offsets = [0, 256], sizes = [8, 128], strides = [1, 1]} : vector<8x384xf32> to vector<8x128xf32>
    %212 = vector.extract_strided_slice %200 {offsets = [0, 256], sizes = [8, 128], strides = [1, 1]} : vector<8x384xf32> to vector<8x128xf32>
    %213 = arith.mulf %209, %212 : vector<8x128xf32>
    %214 = arith.addf %211, %213 : vector<8x128xf32>
    %215 = math.tanh %214 : vector<8x128xf32>
    %cst_50 = arith.constant 1.000000e+00 : f32
    %216 = vector.broadcast %cst_50 : f32 to vector<8x128xf32>
    %217 = arith.subf %216, %210 : vector<8x128xf32>
    %218 = arith.mulf %217, %215 : vector<8x128xf32>
    %219 = arith.mulf %210, %197 : vector<8x128xf32>
    %220 = arith.addf %218, %219 : vector<8x128xf32>
    %221 = vector.extract_strided_slice %220 {offsets = [0, 0], sizes = [8, 32], strides = [1, 1]} : vector<8x128xf32> to vector<8x32xf32>
    %cst_51 = arith.constant dense<0.000000e+00> : vector<8xf32>
    %222 = vector.multi_reduction <add>, %221, %cst_51 [1] : vector<8x32xf32> to vector<8xf32>
    %223 = vector.shape_cast %222 : vector<8xf32> to vector<8x1xf32>
    %cst_52 = arith.constant 3.200000e+01 : f32
    %224 = vector.broadcast %cst_52 : f32 to vector<8x1xf32>
    %225 = arith.divf %223, %224 : vector<8x1xf32>
    %226 = vector.broadcast %225 : vector<8x1xf32> to vector<8x32xf32>
    %227 = arith.subf %221, %226 : vector<8x32xf32>
    %228 = arith.mulf %227, %227 : vector<8x32xf32>
    %cst_53 = arith.constant dense<0.000000e+00> : vector<8xf32>
    %229 = vector.multi_reduction <add>, %228, %cst_53 [1] : vector<8x32xf32> to vector<8xf32>
    %230 = vector.shape_cast %229 : vector<8xf32> to vector<8x1xf32>
    %cst_54 = arith.constant 3.200000e+01 : f32
    %231 = vector.broadcast %cst_54 : f32 to vector<8x1xf32>
    %232 = arith.divf %230, %231 : vector<8x1xf32>
    %233 = vector.broadcast %225 : vector<8x1xf32> to vector<8x32xf32>
    %234 = arith.subf %221, %233 : vector<8x32xf32>
    %cst_55 = arith.constant 9.99999974E-6 : f32
    %235 = vector.broadcast %cst_55 : f32 to vector<8x1xf32>
    %236 = arith.addf %232, %235 : vector<8x1xf32>
    %237 = math.rsqrt %236 : vector<8x1xf32>
    %238 = vector.broadcast %237 : vector<8x1xf32> to vector<8x32xf32>
    %239 = arith.mulf %234, %238 : vector<8x32xf32>
    %c32_56 = arith.constant 32 : index
    %c0_57 = arith.constant 0 : index
    %240 = vector.load %arg3[%c32_56, %c0_57] : memref<88x32xf32, #tpu.memory_space<vmem>>, vector<1x32xf32>
    %241 = vector.broadcast %240 : vector<1x32xf32> to vector<8x32xf32>
    %242 = arith.mulf %239, %241 : vector<8x32xf32>
    %c40_58 = arith.constant 40 : index
    %c0_59 = arith.constant 0 : index
    %243 = vector.load %arg3[%c40_58, %c0_59] : memref<88x32xf32, #tpu.memory_space<vmem>>, vector<1x32xf32>
    %244 = vector.broadcast %243 : vector<1x32xf32> to vector<8x32xf32>
    %245 = arith.addf %242, %244 : vector<8x32xf32>
    %c48_60 = arith.constant 48 : index
    %c0_61 = arith.constant 0 : index
    %246 = vector.load %arg3[%c48_60, %c0_61] : memref<88x32xf32, #tpu.memory_space<vmem>>, vector<32x32xf32>
    %c80 = arith.constant 80 : index
    %c0_62 = arith.constant 0 : index
    %247 = vector.load %arg3[%c80, %c0_62] : memref<88x32xf32, #tpu.memory_space<vmem>>, vector<1x32xf32>
    %cst_63 = arith.constant dense<0.000000e+00> : vector<8x32xf32>
    %248 = tpu.matmul %245, %246, %cst_63 {dimension_numbers = #tpu.dot_dimension_numbers<[1], [0], [0], [1], [0, 0, 1, 1], [], []>} : vector<8x32xf32>, vector<32x32xf32>, vector<8x32xf32> -> vector<8x32xf32>
    %249 = vector.broadcast %247 : vector<1x32xf32> to vector<8x32xf32>
    %250 = arith.addf %248, %249 : vector<8x32xf32>
    %251 = vector.extract_strided_slice %250 {offsets = [0, 0], sizes = [8, 10], strides = [1, 1]} : vector<8x32xf32> to vector<8x10xf32>
    %c0_64 = arith.constant 0 : index
    %c0_65 = arith.constant 0 : index
    %252 = vector.load %arg4[%c0_64, %c0_65] : memref<8x10xf32, #tpu.memory_space<vmem>>, vector<8x10xf32>
    tpu.vector_store %arg4[%c0_64, %c0_65], %251 {strides = array<i32>} : memref<8x10xf32, #tpu.memory_space<vmem>>, vector<8x10xf32>,
    return
  }
  func.func @transform_0(%arg0: i32) -> (i32, i32) {
    %c0_i32 = arith.constant 0 : i32
    %c0_i32_0 = arith.constant 0 : i32
    return %arg0, %c0_i32 : i32, i32
  }
  func.func @transform_1(%arg0: i32) -> (i32, i32) {
    %c0_i32 = arith.constant 0 : i32
    %c0_i32_0 = arith.constant 0 : i32
    %c0_i32_1 = arith.constant 0 : i32
    return %c0_i32, %c0_i32_0 : i32, i32
  }
  func.func @transform_2(%arg0: i32) -> (i32, i32) {
    %c0_i32 = arith.constant 0 : i32
    %c0_i32_0 = arith.constant 0 : i32
    %c0_i32_1 = arith.constant 0 : i32
    return %c0_i32, %c0_i32_0 : i32, i32
  }
  func.func @transform_3(%arg0: i32) -> (i32, i32) {
    %c0_i32 = arith.constant 0 : i32
    %c0_i32_0 = arith.constant 0 : i32
    return %arg0, %c0_i32 : i32, i32
  }
}

</mosaic_0001>

<llo_original>
// kernel: _lambda_.1
$region0: #{_lambda_.1}
  #allocation0 [shape = 'u32[]', space=smem, size = 0x4, offset = 0x4, fixed_abs, tag = 'smem constant byte address 0x4 - core index']
  #allocation1 [shape = 'u32[72,128]{1,0:T(1,128)}', space=vmem, size = 0x9000, scoped, tag = 'internal scratch']
  #allocation2 [shape = 'f32[64,384]{1,0:T(8,128)}', space=vmem, size = 0x18000, scoped, tag = 'scratch operand']
  %s0 = inlined_call_operand.vmem [shape: s32[64,1], index: 0, kind: input, shape index: {}]
  %s1 = inlined_call_operand.hbm [shape: f32[160,384], index: 1, kind: input, shape index: {}]
  %s2 = inlined_call_operand.vmem [shape: f32[88,32], index: 2, kind: input, shape index: {}]
  %s3 = inlined_call_operand.hbm [shape: f32[8,10], index: 3, kind: output, shape index: {}]
  %s4 = sld [smem:[#allocation0]]
  $region26: #{_lambda_.1} parent=0
    _
  %s6 = ssub.s32 1, %s4
  %s7 = scalar_select 0, %s6, %s4
  $region1: #{_lambda_.1} parent=0
    #allocation3 [shape = 'u8[245760]{0}', space=vmem, size = 0x3c000, scoped, tag = 'input window, operand 1, single buffered']
    #allocation4 [shape = 's32[1]{0}', space=sflag, size = 0x4, scoped, tag = 'scoped memory for _lambda_.1']
    #allocation5 [shape = 's32[1]{0}', space=sflag, size = 0x4, scoped, tag = 'scoped memory for _lambda_.1']
    #allocation6 [shape = 'u8[4096]{0}', space=vmem, size = 0x1000, scoped, tag = 'output window, operand 0, single buffered']
    %8 = vsyncpa [#allocation4], 0
    %9 = vsyncpa [#allocation5], 0
    // Predicated region
    $region2: #{_lambda_.1} parent=1 // pred_check
      _
    $region3: #{_lambda_.1} parent=1 // pred_check_branch
      %11 = sbr.rel (0) target = $region5
    $region4: #{_lambda_.1} parent=1 // pred_region
      _
    $region5: #{_lambda_.1} parent=1 // pred_fallthru
      _
    // Predicated region
    $region6: #{_lambda_.1} parent=1 // pred_check
      _
    $region7: #{_lambda_.1} parent=1 // pred_check_branch
      %13 = sbr.rel (0) target = $region9
    $region8: #{_lambda_.1} parent=1 // pred_region
      %15 = vsyncadd [#allocation4], 0
      %s16 = sshll.u32 %s1, 4
      %s17 = int_to_ptr.hbm [resolvable:$true] %s16
      %s18 = sshll.u32 [#allocation3], 4
      %s19 = int_to_ptr.vmem [resolvable:$true] %s18
      %24 = dma.hbm_to_vmem [thread:$0]  %s17, 7680, %s19, [#allocation4], 384, 384, 24
    $region9: #{_lambda_.1} parent=1 // pred_fallthru
      _
    // Predicated region
    $region10: #{_lambda_.1} parent=1 // pred_check
      _
    $region11: #{_lambda_.1} parent=1 // pred_check_branch
      %26 = sbr.rel (0) target = $region13
    $region12: #{_lambda_.1} parent=1 // pred_region
      _
    $region13: #{_lambda_.1} parent=1 // pred_fallthru
      _
    // Predicated region
    $region14: #{_lambda_.1} parent=1 // pred_check
      _
    $region15: #{_lambda_.1} parent=1 // pred_check_branch
      %28 = sbr.rel (0) target = $region17
    $region16: #{_lambda_.1} parent=1 // pred_region
      %30 = dma.done [#allocation4], 7680
    $region17: #{_lambda_.1} parent=1 // pred_fallthru
      _
    %v31 = vld [vmem:[%s0] sm:$0xff]
    %v32 = vld [vmem:[%s0 + $0x8] sm:$0xff]
    %v33 = vld [vmem:[%s0 + $0x10] sm:$0xff]
    %v34 = vld [vmem:[%s0 + $0x18] sm:$0xff]
    %v35 = vld [vmem:[%s0 + $0x20] sm:$0xff]
    %v36 = vld [vmem:[%s0 + $0x28] sm:$0xff]
    %v37 = vld [vmem:[%s0 + $0x30] sm:$0xff]
    %v38 = vld [vmem:[%s0 + $0x38] sm:$0xff]
    %v39 = vlaneseq
    %v40 = vand.u32 %v39, 127
    %41 = vset.pattern.permute.xlu0 0
    %42 = vperm.xlu0 %41, %v31
    %v43 = vpop.permute.xlu0 %42
    %44 = vset.pattern.permute.xlu0 0
    %45 = vperm.xlu0 %44, %v32
    %v46 = vpop.permute.xlu0 %45
    %47 = vset.pattern.permute.xlu0 0
    %48 = vperm.xlu0 %47, %v33
    %v49 = vpop.permute.xlu0 %48
    %50 = vset.pattern.permute.xlu0 0
    %51 = vperm.xlu0 %50, %v34
    %v52 = vpop.permute.xlu0 %51
    %53 = vset.pattern.permute.xlu0 0
    %54 = vperm.xlu0 %53, %v35
    %v55 = vpop.permute.xlu0 %54
    %56 = vset.pattern.permute.xlu0 0
    %57 = vperm.xlu0 %56, %v36
    %v58 = vpop.permute.xlu0 %57
    %59 = vset.pattern.permute.xlu0 0
    %60 = vperm.xlu0 %59, %v37
    %v61 = vpop.permute.xlu0 %60
    %62 = vset.pattern.permute.xlu0 0
    %63 = vperm.xlu0 %62, %v38
    %v64 = vpop.permute.xlu0 %63
    %vm65 = vcmp.eq.s32.totalorder %v40, %v43
    %vm66 = vcmp.eq.s32.totalorder %v40, %v46
    %vm67 = vcmp.eq.s32.totalorder %v40, %v49
    %vm68 = vcmp.eq.s32.totalorder %v40, %v52
    %vm69 = vcmp.eq.s32.totalorder %v40, %v55
    %vm70 = vcmp.eq.s32.totalorder %v40, %v58
    %vm71 = vcmp.eq.s32.totalorder %v40, %v61
    %vm72 = vcmp.eq.s32.totalorder %v40, %v64
    %v73 = vsel %vm65, 1, 0
    %v74 = vsel %vm66, 1, 0
    %v75 = vsel %vm67, 1, 0
    %v76 = vsel %vm68, 1, 0
    %v77 = vsel %vm69, 1, 0
    %v78 = vsel %vm70, 1, 0
    %v79 = vsel %vm71, 1, 0
    %v80 = vsel %vm72, 1, 0
    %v81 = vcvt.s32.f32 %v73
    %v82 = vcvt.s32.f32 %v74
    %v83 = vcvt.s32.f32 %v75
    %v84 = vcvt.s32.f32 %v76
    %v85 = vcvt.s32.f32 %v77
    %v86 = vcvt.s32.f32 %v78
    %v87 = vcvt.s32.f32 %v79
    %v88 = vcvt.s32.f32 %v80
    %v89 = vld [vmem:[%s2] sm:$0xff]
    %v90 = vld [vmem:[%s2 + $0x8] sm:$0xff]
    %v91 = vld [vmem:[%s2 + $0x10] sm:$0xff]
    %v92 = vld [vmem:[%s2 + $0x18] sm:$0xff]
    %vm93 = vcmask 261120
    %v95 = vsel %vm93, %v81, 0
    %v98 = vsel %vm93, %v82, 0
    %v101 = vsel %vm93, %v83, 0
    %v104 = vsel %vm93, %v84, 0
    %v107 = vsel %vm93, %v85, 0
    %v110 = vsel %vm93, %v86, 0
    %v113 = vsel %vm93, %v87, 0
    %v116 = vsel %vm93, %v88, 0
    %118 = vmatpush.msra.mxu0 0.0
    %119 = vmatpush.msra.mxu0 0.0
    %120 = vmatpush.msra.mxu0 0.0
    %121 = vmatpush.msra.mxu0 0.0
    %122 = vmatpush.msra.mxu0 0.0
    %123 = vmatpush.msra.mxu0 0.0
    %124 = vmatpush.msra.mxu0 0.0
    %125 = vmatpush.msra.mxu0 0.0
    %126 = vmatpush.msra.mxu0 0.0
    %127 = vmatpush.msra.mxu0 0.0
    %128 = vmatpush.msra.mxu0 0.0
    %129 = vmatpush.msra.mxu0 0.0
    %130 = vmatpush.msra.mxu0 %v92
    %131 = vmatpush.msra.mxu0 %v91
    %132 = vmatpush.msra.mxu0 %v90
    %133 = vmatpush.msra.mxu0 %v89
    %134 = vmatmul.f32.gmra.mxu0 %v95
    %v135 = vpop.f32.mrf.mxu0
    %v136 = vadd.f32 0.0, %v135
    %137 = vmatmul.f32.gmra.mxu0 %v98
    %v138 = vpop.f32.mrf.mxu0
    %v139 = vadd.f32 0.0, %v138
    %140 = vmatmul.f32.gmra.mxu0 %v101
    %v141 = vpop.f32.mrf.mxu0
    %v142 = vadd.f32 0.0, %v141
    %143 = vmatmul.f32.gmra.mxu0 %v104
    %v144 = vpop.f32.mrf.mxu0
    %v145 = vadd.f32 0.0, %v144
    %146 = vmatmul.f32.gmra.mxu0 %v107
    %v147 = vpop.f32.mrf.mxu0
    %v148 = vadd.f32 0.0, %v147
    %149 = vmatmul.f32.gmra.mxu0 %v110
    %v150 = vpop.f32.mrf.mxu0
    %v151 = vadd.f32 0.0, %v150
    %152 = vmatmul.f32.gmra.mxu0 %v113
    %v153 = vpop.f32.mrf.mxu0
    %v154 = vadd.f32 0.0, %v153
    %155 = vmatmul.f32.gmra.mxu0 %v116
    %v156 = vpop.f32.mrf.mxu0
    %v157 = vadd.f32 0.0, %v156
    %158 = vdwg.mxu0
    %vm159 = vcmask 130048
    %v160 = vsel %vm159, %v136, 0.0
    %161 = vadd.xlane.f32.xlu0 %v160
    %v162 = vpop.xlane.xlu0 %161
    %v163 = vsel %vm159, %v139, 0.0
    %164 = vadd.xlane.f32.xlu0 %v163
    %v165 = vpop.xlane.xlu0 %164
    %v166 = vsel %vm159, %v142, 0.0
    %167 = vadd.xlane.f32.xlu0 %v166
    %v168 = vpop.xlane.xlu0 %167
    %v169 = vsel %vm159, %v145, 0.0
    %170 = vadd.xlane.f32.xlu0 %v169
    %v171 = vpop.xlane.xlu0 %170
    %v172 = vsel %vm159, %v148, 0.0
    %173 = vadd.xlane.f32.xlu0 %v172
    %v174 = vpop.xlane.xlu0 %173
    %v175 = vsel %vm159, %v151, 0.0
    %176 = vadd.xlane.f32.xlu0 %v175
    %v177 = vpop.xlane.xlu0 %176
    %v178 = vsel %vm159, %v154, 0.0
    %179 = vadd.xlane.f32.xlu0 %v178
    %v180 = vpop.xlane.xlu0 %179
    %v181 = vsel %vm159, %v157, 0.0
    %182 = vadd.xlane.f32.xlu0 %v181
    %v183 = vpop.xlane.xlu0 %182
    %v184 = vrcp.pop 16.0
    %v185 = vmul.f32 16.0, %v184
    %v186 = vsub.f32 1.0, %v185
    %v187 = vmul.f32 %v184, %v186
    %v188 = vadd.f32 %v184, %v187
    %vm189 = vweird.f32 %v184
    %v190 = vsel %vm189, %v184, %v188
    %v191 = vmul.f32 %v162, %v190
    %v192 = vmul.f32 %v165, %v190
    %v193 = vmul.f32 %v168, %v190
    %v194 = vmul.f32 %v171, %v190
    %v195 = vmul.f32 %v174, %v190
    %v196 = vmul.f32 %v177, %v190
    %v197 = vmul.f32 %v180, %v190
    %v198 = vmul.f32 %v183, %v190
    %v199 = vsub.f32 %v136, %v191
    %v200 = vsub.f32 %v139, %v192
    %v201 = vsub.f32 %v142, %v193
    %v202 = vsub.f32 %v145, %v194
    %v203 = vsub.f32 %v148, %v195
    %v204 = vsub.f32 %v151, %v196
    %v205 = vsub.f32 %v154, %v197
    %v206 = vsub.f32 %v157, %v198
    %v207 = vmul.f32 %v199, %v199
    %v208 = vmul.f32 %v200, %v200
    %v209 = vmul.f32 %v201, %v201
    %v210 = vmul.f32 %v202, %v202
    %v211 = vmul.f32 %v203, %v203
    %v212 = vmul.f32 %v204, %v204
    %v213 = vmul.f32 %v205, %v205
    %v214 = vmul.f32 %v206, %v206
    %v215 = vsel %vm159, %v207, 0.0
    %216 = vadd.xlane.f32.xlu0 %v215
    %v217 = vpop.xlane.xlu0 %216
    %v218 = vsel %vm159, %v208, 0.0
    %219 = vadd.xlane.f32.xlu0 %v218
    %v220 = vpop.xlane.xlu0 %219
    %v221 = vsel %vm159, %v209, 0.0
    %222 = vadd.xlane.f32.xlu0 %v221
    %v223 = vpop.xlane.xlu0 %222
    %v224 = vsel %vm159, %v210, 0.0
    %225 = vadd.xlane.f32.xlu0 %v224
    %v226 = vpop.xlane.xlu0 %225
    %v227 = vsel %vm159, %v211, 0.0
    %228 = vadd.xlane.f32.xlu0 %v227
    %v229 = vpop.xlane.xlu0 %228
    %v230 = vsel %vm159, %v212, 0.0
    %231 = vadd.xlane.f32.xlu0 %v230
    %v232 = vpop.xlane.xlu0 %231
    %v233 = vsel %vm159, %v213, 0.0
    %234 = vadd.xlane.f32.xlu0 %v233
    %v235 = vpop.xlane.xlu0 %234
    %v236 = vsel %vm159, %v214, 0.0
    %237 = vadd.xlane.f32.xlu0 %v236
    %v238 = vpop.xlane.xlu0 %237
    %v239 = vmul.f32 %v217, %v190
    %v240 = vmul.f32 %v220, %v190
    %v241 = vmul.f32 %v223, %v190
    %v242 = vmul.f32 %v226, %v190
    %v243 = vmul.f32 %v229, %v190
    %v244 = vmul.f32 %v232, %v190
    %v245 = vmul.f32 %v235, %v190
    %v246 = vmul.f32 %v238, %v190
    %v247 = vadd.f32 %v239, 1e-05
    %v248 = vadd.f32 %v240, 1e-05
    %v249 = vadd.f32 %v241, 1e-05
    %v250 = vadd.f32 %v242, 1e-05
    %v251 = vadd.f32 %v243, 1e-05
    %v252 = vadd.f32 %v244, 1e-05
    %v253 = vadd.f32 %v245, 1e-05
    %v254 = vadd.f32 %v246, 1e-05
    %v255 = vrsqrt.pop %v247
    %v256 = vmul.f32 %v255, %v247
    %v257 = vmul.f32 %v256, %v255
    %v258 = vmul.f32 0.5, %v257
    %v259 = vsub.f32 1.5, %v258
    %v260 = vmul.f32 %v255, %v259
    %vm261 = vweird.f32 %v247
    %vm262 = vweird.f32 %v255
    %vm263 = vmor %vm261, %vm262
    %v264 = vsel %vm263, %v255, %v260
    %v265 = vrsqrt.pop %v248
    %v266 = vmul.f32 %v265, %v248
    %v267 = vmul.f32 %v266, %v265
    %v268 = vmul.f32 0.5, %v267
    %v269 = vsub.f32 1.5, %v268
    %v270 = vmul.f32 %v265, %v269
    %vm271 = vweird.f32 %v248
    %vm272 = vweird.f32 %v265
    %vm273 = vmor %vm271, %vm272
    %v274 = vsel %vm273, %v265, %v270
    %v275 = vrsqrt.pop %v249
    %v276 = vmul.f32 %v275, %v249
    %v277 = vmul.f32 %v276, %v275
    %v278 = vmul.f32 0.5, %v277
    %v279 = vsub.f32 1.5, %v278
    %v280 = vmul.f32 %v275, %v279
    %vm281 = vweird.f32 %v249
    %vm282 = vweird.f32 %v275
    %vm283 = vmor %vm281, %vm282
    %v284 = vsel %vm283, %v275, %v280
    %v285 = vrsqrt.pop %v250
    %v286 = vmul.f32 %v285, %v250
    %v287 = vmul.f32 %v286, %v285
    %v288 = vmul.f32 0.5, %v287
    %v289 = vsub.f32 1.5, %v288
    %v290 = vmul.f32 %v285, %v289
    %vm291 = vweird.f32 %v250
    %vm292 = vweird.f32 %v285
    %vm293 = vmor %vm291, %vm292
    %v294 = vsel %vm293, %v285, %v290
    %v295 = vrsqrt.pop %v251
    %v296 = vmul.f32 %v295, %v251
    %v297 = vmul.f32 %v296, %v295
    %v298 = vmul.f32 0.5, %v297
    %v299 = vsub.f32 1.5, %v298
    %v300 = vmul.f32 %v295, %v299
    %vm301 = vweird.f32 %v251
    %vm302 = vweird.f32 %v295
    %vm303 = vmor %vm301, %vm302
    %v304 = vsel %vm303, %v295, %v300
    %v305 = vrsqrt.pop %v252
    %v306 = vmul.f32 %v305, %v252
    %v307 = vmul.f32 %v306, %v305
    %v308 = vmul.f32 0.5, %v307
    %v309 = vsub.f32 1.5, %v308
    %v310 = vmul.f32 %v305, %v309
    %vm311 = vweird.f32 %v252
    %vm312 = vweird.f32 %v305
    %vm313 = vmor %vm311, %vm312
    %v314 = vsel %vm313, %v305, %v310
    %v315 = vrsqrt.pop %v253
    %v316 = vmul.f32 %v315, %v253
    %v317 = vmul.f32 %v316, %v315
    %v318 = vmul.f32 0.5, %v317
    %v319 = vsub.f32 1.5, %v318
    %v320 = vmul.f32 %v315, %v319
    %vm321 = vweird.f32 %v253
    %vm322 = vweird.f32 %v315
    %vm323 = vmor %vm321, %vm322
    %v324 = vsel %vm323, %v315, %v320
    %v325 = vrsqrt.pop %v254
    %v326 = vmul.f32 %v325, %v254
    %v327 = vmul.f32 %v326, %v325
    %v328 = vmul.f32 0.5, %v327
    %v329 = vsub.f32 1.5, %v328
    %v330 = vmul.f32 %v325, %v329
    %vm331 = vweird.f32 %v254
    %vm332 = vweird.f32 %v325
    %vm333 = vmor %vm331, %vm332
    %v334 = vsel %vm333, %v325, %v330
    %v335 = vmul.f32 %v199, %v264
    %v336 = vmul.f32 %v200, %v274
    %v337 = vmul.f32 %v201, %v284
    %v338 = vmul.f32 %v202, %v294
    %v339 = vmul.f32 %v203, %v304
    %v340 = vmul.f32 %v204, %v314
    %v341 = vmul.f32 %v205, %v324
    %v342 = vmul.f32 %v206, %v334
    %v343 = vld [vmem:[#allocation3] sm:$0xff]
    %v344 = vld [vmem:[#allocation3 + $0x8] sm:$0xff]
    %v345 = vld [vmem:[#allocation3 + $0x10] sm:$0xff]
    %v346 = vld [vmem:[#allocation3 + $0x18] sm:$0xff]
    %v347 = vld [vmem:[#allocation3 + $0x20] sm:$0xff]
    %v348 = vld [vmem:[#allocation3 + $0x28] sm:$0xff]
    %s349 = scalar_lea.vmem [#allocation3], 432
    %v350 = vld [vmem:[%s349] ss:$8 sm:$0x7]
    %v352 = vperm.slane %v350, 0
    %v353 = vperm.slane %v350, 1
    %v354 = vperm.slane %v350, 2
    %v359 = vsel %vm159, %v335, 0
    %v362 = vsel %vm159, %v336, 0
    %v365 = vsel %vm159, %v337, 0
    %v368 = vsel %vm159, %v338, 0
    %v371 = vsel %vm159, %v339, 0
    %v374 = vsel %vm159, %v340, 0
    %v377 = vsel %vm159, %v341, 0
    %v380 = vsel %vm159, %v342, 0
    %382 = vmatpush.msra.mxu0 0.0
    %383 = vmatpush.msra.mxu0 0.0
    %384 = vmatpush.msra.mxu0 0.0
    %385 = vmatpush.msra.mxu0 0.0
    %386 = vmatpush.msra.mxu0 0.0
    %387 = vmatpush.msra.mxu0 0.0
    %388 = vmatpush.msra.mxu0 0.0
    %389 = vmatpush.msra.mxu0 0.0
    %390 = vmatpush.msra.mxu0 0.0
    %391 = vmatpush.msra.mxu0 0.0
    %392 = vmatpush.msra.mxu0 0.0
    %393 = vmatpush.msra.mxu0 0.0
    %394 = vmatpush.msra.mxu0 0.0
    %395 = vmatpush.msra.mxu0 0.0
    %396 = vmatpush.msra.mxu0 %v346
    %397 = vmatpush.msra.mxu0 %v343
    %398 = vmatmul.f32.gmra.mxu0 %v359
    %v399 = vpop.f32.mrf.mxu0
    %v400 = vadd.f32 %v352, %v399
    %401 = vmatmul.f32.gmra.mxu0 %v362
    %v402 = vpop.f32.mrf.mxu0
    %v403 = vadd.f32 %v352, %v402
    %404 = vmatmul.f32.gmra.mxu0 %v365
    %v405 = vpop.f32.mrf.mxu0
    %v406 = vadd.f32 %v352, %v405
    %407 = vmatmul.f32.gmra.mxu0 %v368
    %v408 = vpop.f32.mrf.mxu0
    %v409 = vadd.f32 %v352, %v408
    %410 = vmatmul.f32.gmra.mxu0 %v371
    %v411 = vpop.f32.mrf.mxu0
    %v412 = vadd.f32 %v352, %v411
    %413 = vmatmul.f32.gmra.mxu0 %v374
    %v414 = vpop.f32.mrf.mxu0
    %v415 = vadd.f32 %v352, %v414
    %416 = vmatmul.f32.gmra.mxu0 %v377
    %v417 = vpop.f32.mrf.mxu0
    %v418 = vadd.f32 %v352, %v417
    %419 = vmatmul.f32.gmra.mxu0 %v380
    %v420 = vpop.f32.mrf.mxu0
    %v421 = vadd.f32 %v352, %v420
    %422 = vdwg.mxu0
    %423 = vmatpush.msra.mxu0 0.0
    %424 = vmatpush.msra.mxu0 0.0
    %425 = vmatpush.msra.mxu0 0.0
    %426 = vmatpush.msra.mxu0 0.0
    %427 = vmatpush.msra.mxu0 0.0
    %428 = vmatpush.msra.mxu0 0.0
    %429 = vmatpush.msra.mxu0 0.0
    %430 = vmatpush.msra.mxu0 0.0
    %431 = vmatpush.msra.mxu0 0.0
    %432 = vmatpush.msra.mxu0 0.0
    %433 = vmatpush.msra.mxu0 0.0
    %434 = vmatpush.msra.mxu0 0.0
    %435 = vmatpush.msra.mxu0 0.0
    %436 = vmatpush.msra.mxu0 0.0
    %437 = vmatpush.msra.mxu0 %v347
    %438 = vmatpush.msra.mxu0 %v344
    %439 = vmatmul.f32.gmra.mxu0 %v359
    %v440 = vpop.f32.mrf.mxu0
    %v441 = vadd.f32 %v353, %v440
    %442 = vmatmul.f32.gmra.mxu0 %v362
    %v443 = vpop.f32.mrf.mxu0
    %v444 = vadd.f32 %v353, %v443
    %445 = vmatmul.f32.gmra.mxu0 %v365
    %v446 = vpop.f32.mrf.mxu0
    %v447 = vadd.f32 %v353, %v446
    %448 = vmatmul.f32.gmra.mxu0 %v368
    %v449 = vpop.f32.mrf.mxu0
    %v450 = vadd.f32 %v353, %v449
    %451 = vmatmul.f32.gmra.mxu0 %v371
    %v452 = vpop.f32.mrf.mxu0
    %v453 = vadd.f32 %v353, %v452
    %454 = vmatmul.f32.gmra.mxu0 %v374
    %v455 = vpop.f32.mrf.mxu0
    %v456 = vadd.f32 %v353, %v455
    %457 = vmatmul.f32.gmra.mxu0 %v377
    %v458 = vpop.f32.mrf.mxu0
    %v459 = vadd.f32 %v353, %v458
    %460 = vmatmul.f32.gmra.mxu0 %v380
    %v461 = vpop.f32.mrf.mxu0
    %v462 = vadd.f32 %v353, %v461
    %463 = vdwg.mxu0
    %464 = vmatpush.msra.mxu0 0.0
    %465 = vmatpush.msra.mxu0 0.0
    %466 = vmatpush.msra.mxu0 0.0
    %467 = vmatpush.msra.mxu0 0.0
    %468 = vmatpush.msra.mxu0 0.0
    %469 = vmatpush.msra.mxu0 0.0
    %470 = vmatpush.msra.mxu0 0.0
    %471 = vmatpush.msra.mxu0 0.0
    %472 = vmatpush.msra.mxu0 0.0
    %473 = vmatpush.msra.mxu0 0.0
    %474 = vmatpush.msra.mxu0 0.0
    %475 = vmatpush.msra.mxu0 0.0
    %476 = vmatpush.msra.mxu0 0.0
    %477 = vmatpush.msra.mxu0 0.0
    %478 = vmatpush.msra.mxu0 %v348
    %479 = vmatpush.msra.mxu0 %v345
    %480 = vmatmul.f32.gmra.mxu0 %v359
    %v481 = vpop.f32.mrf.mxu0
    %v482 = vadd.f32 %v354, %v481
    %483 = vmatmul.f32.gmra.mxu0 %v362
    %v484 = vpop.f32.mrf.mxu0
    %v485 = vadd.f32 %v354, %v484
    %486 = vmatmul.f32.gmra.mxu0 %v365
    %v487 = vpop.f32.mrf.mxu0
    %v488 = vadd.f32 %v354, %v487
    %489 = vmatmul.f32.gmra.mxu0 %v368
    %v490 = vpop.f32.mrf.mxu0
    %v491 = vadd.f32 %v354, %v490
    %492 = vmatmul.f32.gmra.mxu0 %v371
    %v493 = vpop.f32.mrf.mxu0
    %v494 = vadd.f32 %v354, %v493
    %495 = vmatmul.f32.gmra.mxu0 %v374
    %v496 = vpop.f32.mrf.mxu0
    %v497 = vadd.f32 %v354, %v496
    %498 = vmatmul.f32.gmra.mxu0 %v377
    %v499 = vpop.f32.mrf.mxu0
    %v500 = vadd.f32 %v354, %v499
    %501 = vmatmul.f32.gmra.mxu0 %v380
    %v502 = vpop.f32.mrf.mxu0
    %v503 = vadd.f32 %v354, %v502
    %504 = vdwg.mxu0
    %505 = vst [vmem:[#allocation2] sm:$0xff] %v400
    %506 = vst [vmem:[#allocation2 + $0x8] sm:$0xff] %v441
    %507 = vst [vmem:[#allocation2 + $0x10] sm:$0xff] %v482
    %508 = vst [vmem:[#allocation2 + $0x18] sm:$0xff] %v403
    %509 = vst [vmem:[#allocation2 + $0x20] sm:$0xff] %v444
    %510 = vst [vmem:[#allocation2 + $0x28] sm:$0xff] %v485
    %511 = vst [vmem:[#allocation2 + $0x30] sm:$0xff] %v406
    %512 = vst [vmem:[#allocation2 + $0x38] sm:$0xff] %v447
    %513 = vst [vmem:[#allocation2 + $0x40] sm:$0xff] %v488
    %514 = vst [vmem:[#allocation2 + $0x48] sm:$0xff] %v409
    %515 = vst [vmem:[#allocation2 + $0x50] sm:$0xff] %v450
    %516 = vst [vmem:[#allocation2 + $0x58] sm:$0xff] %v491
    %517 = vst [vmem:[#allocation2 + $0x60] sm:$0xff] %v412
    %518 = vst [vmem:[#allocation2 + $0x68] sm:$0xff] %v453
    %519 = vst [vmem:[#allocation2 + $0x70] sm:$0xff] %v494
    %520 = vst [vmem:[#allocation2 + $0x78] sm:$0xff] %v415
    %521 = vst [vmem:[#allocation2 + $0x80] sm:$0xff] %v456
    %522 = vst [vmem:[#allocation2 + $0x88] sm:$0xff] %v497
    %523 = vst [vmem:[#allocation2 + $0x90] sm:$0xff] %v418
    %524 = vst [vmem:[#allocation2 + $0x98] sm:$0xff] %v459
    %525 = vst [vmem:[#allocation2 + $0xa0] sm:$0xff] %v500
    %526 = vst [vmem:[#allocation2 + $0xa8] sm:$0xff] %v421
    %527 = vst [vmem:[#allocation2 + $0xb0] sm:$0xff] %v462
    %528 = vst [vmem:[#allocation2 + $0xb8] sm:$0xff] %v503
    %v529 = vld [vmem:[#allocation3 + $0x30] sm:$0xff]
    %v530 = vld [vmem:[#allocation3 + $0x38] sm:$0xff]
    %v531 = vld [vmem:[#allocation3 + $0x40] sm:$0xff]
    %v532 = vld [vmem:[#allocation3 + $0x48] sm:$0xff]
    %v533 = vld [vmem:[#allocation3 + $0x50] sm:$0xff]
    %v534 = vld [vmem:[#allocation3 + $0x58] sm:$0xff]
    %v535 = vld [vmem:[#allocation3 + $0x60] sm:$0xff]
    %v536 = vld [vmem:[#allocation3 + $0x68] sm:$0xff]
    %v537 = vld [vmem:[#allocation3 + $0x70] sm:$0xff]
    %v538 = vld [vmem:[#allocation3 + $0x78] sm:$0xff]
    %v539 = vld [vmem:[#allocation3 + $0x80] sm:$0xff]
    %v540 = vld [vmem:[#allocation3 + $0x88] sm:$0xff]
    %v541 = vld [vmem:[#allocation3 + $0x90] sm:$0xff]
    %v542 = vld [vmem:[#allocation3 + $0x98] sm:$0xff]
    %v543 = vld [vmem:[#allocation3 + $0xa0] sm:$0xff]
    %v544 = vld [vmem:[#allocation3 + $0xa8] sm:$0xff]
    %v545 = vld [vmem:[#allocation3 + $0xb0] sm:$0xff]
    %v546 = vld [vmem:[#allocation3 + $0xb8] sm:$0xff]
    %v547 = vld [vmem:[#allocation3 + $0xc0] sm:$0xff]
    %v548 = vld [vmem:[#allocation3 + $0xc8] sm:$0xff]
    %v549 = vld [vmem:[#allocation3 + $0xd0] sm:$0xff]
    %v550 = vld [vmem:[#allocation3 + $0xd8] sm:$0xff]
    %v551 = vld [vmem:[#allocation3 + $0xe0] sm:$0xff]
    %v552 = vld [vmem:[#allocation3 + $0xe8] sm:$0xff]
    %v553 = vld [vmem:[#allocation3 + $0xf0] sm:$0xff]
    %v554 = vld [vmem:[#allocation3 + $0xf8] sm:$0xff]
    %v555 = vld [vmem:[#allocation3 + $0x100] sm:$0xff]
    %v556 = vld [vmem:[#allocation3 + $0x108] sm:$0xff]
    %v557 = vld [vmem:[#allocation3 + $0x110] sm:$0xff]
    %v558 = vld [vmem:[#allocation3 + $0x118] sm:$0xff]
    %v559 = vld [vmem:[#allocation3 + $0x120] sm:$0xff]
    %v560 = vld [vmem:[#allocation3 + $0x128] sm:$0xff]
    %v561 = vld [vmem:[#allocation3 + $0x130] sm:$0xff]
    %v562 = vld [vmem:[#allocation3 + $0x138] sm:$0xff]
    %v563 = vld [vmem:[#allocation3 + $0x140] sm:$0xff]
    %v564 = vld [vmem:[#allocation3 + $0x148] sm:$0xff]
    %v565 = vld [vmem:[#allocation3 + $0x150] sm:$0xff]
    %v566 = vld [vmem:[#allocation3 + $0x158] sm:$0xff]
    %v567 = vld [vmem:[#allocation3 + $0x160] sm:$0xff]
    %v568 = vld [vmem:[#allocation3 + $0x168] sm:$0xff]
    %v569 = vld [vmem:[#allocation3 + $0x170] sm:$0xff]
    %v570 = vld [vmem:[#allocation3 + $0x178] sm:$0xff]
    %v571 = vld [vmem:[#allocation3 + $0x180] sm:$0xff]
    %v572 = vld [vmem:[#allocation3 + $0x188] sm:$0xff]
    %v573 = vld [vmem:[#allocation3 + $0x190] sm:$0xff]
    %v574 = vld [vmem:[#allocation3 + $0x198] sm:$0xff]
    %v575 = vld [vmem:[#allocation3 + $0x1a0] sm:$0xff]
    %v576 = vld [vmem:[#allocation3 + $0x1a8] sm:$0xff]
    %s577 = scalar_lea.vmem [#allocation3], 456
    %v578 = vld [vmem:[%s577] ss:$8 sm:$0x7]
    %v580 = vperm.slane %v578, 0
    %v581 = vperm.slane %v578, 1
    %v582 = vperm.slane %v578, 2
    %v586 = vld [vmem:[#allocation2] sm:$0xff]
    %v587 = vld [vmem:[#allocation2 + $0x8] sm:$0xff]
    %v588 = vld [vmem:[#allocation2 + $0x10] sm:$0xff]
    %589 = vmatpush.msra.mxu0 %v574
    %590 = vmatpush.msra.mxu0 %v571
    %591 = vmatpush.msra.mxu0 %v568
    %592 = vmatpush.msra.mxu0 %v565
    %593 = vmatpush.msra.mxu0 %v562
    %594 = vmatpush.msra.mxu0 %v559
    %595 = vmatpush.msra.mxu0 %v556
    %596 = vmatpush.msra.mxu0 %v553
    %597 = vmatpush.msra.mxu0 %v550
    %598 = vmatpush.msra.mxu0 %v547
    %599 = vmatpush.msra.mxu0 %v544
    %600 = vmatpush.msra.mxu0 %v541
    %601 = vmatpush.msra.mxu0 %v538
    %602 = vmatpush.msra.mxu0 %v535
    %603 = vmatpush.msra.mxu0 %v532
    %604 = vmatpush.msra.mxu0 %v529
    %605 = vmatmul.f32.gmra.mxu0 0.0
    %v606 = vpop.f32.mrf.mxu0
    %v607 = vadd.f32 %v580, %v606
    %608 = vdwg.mxu0
    %609 = vmatpush.msra.mxu0 %v575
    %610 = vmatpush.msra.mxu0 %v572
    %611 = vmatpush.msra.mxu0 %v569
    %612 = vmatpush.msra.mxu0 %v566
    %613 = vmatpush.msra.mxu0 %v563
    %614 = vmatpush.msra.mxu0 %v560
    %615 = vmatpush.msra.mxu0 %v557
    %616 = vmatpush.msra.mxu0 %v554
    %617 = vmatpush.msra.mxu0 %v551
    %618 = vmatpush.msra.mxu0 %v548
    %619 = vmatpush.msra.mxu0 %v545
    %620 = vmatpush.msra.mxu0 %v542
    %621 = vmatpush.msra.mxu0 %v539
    %622 = vmatpush.msra.mxu0 %v536
    %623 = vmatpush.msra.mxu0 %v533
    %624 = vmatpush.msra.mxu0 %v530
    %625 = vmatmul.f32.gmra.mxu0 0.0
    %v626 = vpop.f32.mrf.mxu0
    %v627 = vadd.f32 %v581, %v626
    %628 = vdwg.mxu0
    %629 = vmatpush.msra.mxu0 %v576
    %630 = vmatpush.msra.mxu0 %v573
    %631 = vmatpush.msra.mxu0 %v570
    %632 = vmatpush.msra.mxu0 %v567
    %633 = vmatpush.msra.mxu0 %v564
    %634 = vmatpush.msra.mxu0 %v561
    %635 = vmatpush.msra.mxu0 %v558
    %636 = vmatpush.msra.mxu0 %v555
    %637 = vmatpush.msra.mxu0 %v552
    %638 = vmatpush.msra.mxu0 %v549
    %639 = vmatpush.msra.mxu0 %v546
    %640 = vmatpush.msra.mxu0 %v543
    %641 = vmatpush.msra.mxu0 %v540
    %642 = vmatpush.msra.mxu0 %v537
    %643 = vmatpush.msra.mxu0 %v534
    %644 = vmatpush.msra.mxu0 %v531
    %645 = vmatmul.f32.gmra.mxu0 0.0
    %v646 = vpop.f32.mrf.mxu0
    %v647 = vadd.f32 %v582, %v646
    %648 = vdwg.mxu0
    %v649 = vadd.f32 %v586, %v607
    %v650 = vadd.f32 %v587, %v627
    %v651 = vxor.u32 %v649, 2147483648
    %v652 = vxor.u32 %v650, 2147483648
    %v653 = vmul.f32 %v651, 1.442695
    %v654 = vpow.pop %v653
    %v655 = vmul.f32 %v652, 1.442695
    %v656 = vpow.pop %v655
    %v657 = vadd.f32 %v654, 1.0
    %v658 = vadd.f32 %v656, 1.0
    %v659 = vrcp.pop %v657
    %v660 = vmul.f32 %v657, %v659
    %v661 = vsub.f32 1.0, %v660
    %v662 = vmul.f32 %v659, %v661
    %v663 = vadd.f32 %v659, %v662
    %vm664 = vweird.f32 %v657
    %vm665 = vweird.f32 %v659
    %vm666 = vmor %vm664, %vm665
    %v667 = vsel %vm666, %v659, %v663
    %v668 = vand.u32 2147483647, %v657
    %vm669 = vcmp.eq.f32.partialorder %v668, 8.507059e+37
    %v670 = vand.u32 %v657, 2147483648
    %v671 = vor.u32 1.1754944e-38, %v670
    %v672 = vsel %vm669, %v671, %v667
    %v673 = vmul.f32 1.0, %v672
    %v674 = vrcp.pop %v658
    %v675 = vmul.f32 %v658, %v674
    %v676 = vsub.f32 1.0, %v675
    %v677 = vmul.f32 %v674, %v676
    %v678 = vadd.f32 %v674, %v677
    %vm679 = vweird.f32 %v658
    %vm680 = vweird.f32 %v674
    %vm681 = vmor %vm679, %vm680
    %v682 = vsel %vm681, %v674, %v678
    %v683 = vand.u32 2147483647, %v658
    %vm684 = vcmp.eq.f32.partialorder %v683, 8.507059e+37
    %v685 = vand.u32 %v658, 2147483648
    %v686 = vor.u32 1.1754944e-38, %v685
    %v687 = vsel %vm684, %v686, %v682
    %v688 = vmul.f32 1.0, %v687
    %v689 = vmul.f32 %v673, %v647
    %v690 = vadd.f32 %v588, %v689
    %v691 = vtanh.pop %v690
    %v692 = vsub.f32 1.0, %v688
    %v693 = vmul.f32 %v692, %v691
    %v694 = vmul.f32 %v688, 0.0
    %v695 = vadd.f32 %v693, %v694
    %v696 = vld [vmem:[#allocation2 + $0x18] sm:$0xff]
    %v697 = vld [vmem:[#allocation2 + $0x20] sm:$0xff]
    %v698 = vld [vmem:[#allocation2 + $0x28] sm:$0xff]
    %699 = vmatpush.msra.mxu0 %v574
    %700 = vmatpush.msra.mxu0 %v571
    %701 = vmatpush.msra.mxu0 %v568
    %702 = vmatpush.msra.mxu0 %v565
    %703 = vmatpush.msra.mxu0 %v562
    %704 = vmatpush.msra.mxu0 %v559
    %705 = vmatpush.msra.mxu0 %v556
    %706 = vmatpush.msra.mxu0 %v553
    %707 = vmatpush.msra.mxu0 %v550
    %708 = vmatpush.msra.mxu0 %v547
    %709 = vmatpush.msra.mxu0 %v544
    %710 = vmatpush.msra.mxu0 %v541
    %711 = vmatpush.msra.mxu0 %v538
    %712 = vmatpush.msra.mxu0 %v535
    %713 = vmatpush.msra.mxu0 %v532
    %714 = vmatpush.msra.mxu0 %v529
    %715 = vmatmul.f32.gmra.mxu0 %v695
    %v716 = vpop.f32.mrf.mxu0
    %v717 = vadd.f32 %v580, %v716
    %718 = vdwg.mxu0
    %719 = vmatpush.msra.mxu0 %v575
    %720 = vmatpush.msra.mxu0 %v572
    %721 = vmatpush.msra.mxu0 %v569
    %722 = vmatpush.msra.mxu0 %v566
    %723 = vmatpush.msra.mxu0 %v563
    %724 = vmatpush.msra.mxu0 %v560
    %725 = vmatpush.msra.mxu0 %v557
    %726 = vmatpush.msra.mxu0 %v554
    %727 = vmatpush.msra.mxu0 %v551
    %728 = vmatpush.msra.mxu0 %v548
    %729 = vmatpush.msra.mxu0 %v545
    %730 = vmatpush.msra.mxu0 %v542
    %731 = vmatpush.msra.mxu0 %v539
    %732 = vmatpush.msra.mxu0 %v536
    %733 = vmatpush.msra.mxu0 %v533
    %734 = vmatpush.msra.mxu0 %v530
    %735 = vmatmul.f32.gmra.mxu0 %v695
    %v736 = vpop.f32.mrf.mxu0
    %v737 = vadd.f32 %v581, %v736
    %738 = vdwg.mxu0
    %739 = vmatpush.msra.mxu0 %v576
    %740 = vmatpush.msra.mxu0 %v573
    %741 = vmatpush.msra.mxu0 %v570
    %742 = vmatpush.msra.mxu0 %v567
    %743 = vmatpush.msra.mxu0 %v564
    %744 = vmatpush.msra.mxu0 %v561
    %745 = vmatpush.msra.mxu0 %v558
    %746 = vmatpush.msra.mxu0 %v555
    %747 = vmatpush.msra.mxu0 %v552
    %748 = vmatpush.msra.mxu0 %v549
    %749 = vmatpush.msra.mxu0 %v546
    %750 = vmatpush.msra.mxu0 %v543
    %751 = vmatpush.msra.mxu0 %v540
    %752 = vmatpush.msra.mxu0 %v537
    %753 = vmatpush.msra.mxu0 %v534
    %754 = vmatpush.msra.mxu0 %v531
    %755 = vmatmul.f32.gmra.mxu0 %v695
    %v756 = vpop.f32.mrf.mxu0
    %v757 = vadd.f32 %v582, %v756
    %758 = vdwg.mxu0
    %v759 = vadd.f32 %v696, %v717
    %v760 = vadd.f32 %v697, %v737
    %v761 = vxor.u32 %v759, 2147483648
    %v762 = vxor.u32 %v760, 2147483648
    %v763 = vmul.f32 %v761, 1.442695
    %v764 = vpow.pop %v763
    %v765 = vmul.f32 %v762, 1.442695
    %v766 = vpow.pop %v765
    %v767 = vadd.f32 %v764, 1.0
    %v768 = vadd.f32 %v766, 1.0
    %v769 = vrcp.pop %v767
    %v770 = vmul.f32 %v767, %v769
    %v771 = vsub.f32 1.0, %v770
    %v772 = vmul.f32 %v769, %v771
    %v773 = vadd.f32 %v769, %v772
    %vm774 = vweird.f32 %v767
    %vm775 = vweird.f32 %v769
    %vm776 = vmor %vm774, %vm775
    %v777 = vsel %vm776, %v769, %v773
    %v778 = vand.u32 2147483647, %v767
    %vm779 = vcmp.eq.f32.partialorder %v778, 8.507059e+37
    %v780 = vand.u32 %v767, 2147483648
    %v781 = vor.u32 1.1754944e-38, %v780
    %v782 = vsel %vm779, %v781, %v777
    %v783 = vmul.f32 1.0, %v782
    %v784 = vrcp.pop %v768
    %v785 = vmul.f32 %v768, %v784
    %v786 = vsub.f32 1.0, %v785
    %v787 = vmul.f32 %v784, %v786
    %v788 = vadd.f32 %v784, %v787
    %vm789 = vweird.f32 %v768
    %vm790 = vweird.f32 %v784
    %vm791 = vmor %vm789, %vm790
    %v792 = vsel %vm791, %v784, %v788
    %v793 = vand.u32 2147483647, %v768
    %vm794 = vcmp.eq.f32.partialorder %v793, 8.507059e+37
    %v795 = vand.u32 %v768, 2147483648
    %v796 = vor.u32 1.1754944e-38, %v795
    %v797 = vsel %vm794, %v796, %v792
    %v798 = vmul.f32 1.0, %v797
    %v799 = vmul.f32 %v783, %v757
    %v800 = vadd.f32 %v698, %v799
    %v801 = vtanh.pop %v800
    %v802 = vsub.f32 1.0, %v798
    %v803 = vmul.f32 %v802, %v801
    %v804 = vmul.f32 %v798, %v695
    %v805 = vadd.f32 %v803, %v804
    %v806 = vld [vmem:[#allocation2 + $0x30] sm:$0xff]
    %v807 = vld [vmem:[#allocation2 + $0x38] sm:$0xff]
    %v808 = vld [vmem:[#allocation2 + $0x40] sm:$0xff]
    %809 = vmatpush.msra.mxu0 %v574
    %810 = vmatpush.msra.mxu0 %v571
    %811 = vmatpush.msra.mxu0 %v568
    %812 = vmatpush.msra.mxu0 %v565
    %813 = vmatpush.msra.mxu0 %v562
    %814 = vmatpush.msra.mxu0 %v559
    %815 = vmatpush.msra.mxu0 %v556
    %816 = vmatpush.msra.mxu0 %v553
    %817 = vmatpush.msra.mxu0 %v550
    %818 = vmatpush.msra.mxu0 %v547
    %819 = vmatpush.msra.mxu0 %v544
    %820 = vmatpush.msra.mxu0 %v541
    %821 = vmatpush.msra.mxu0 %v538
    %822 = vmatpush.msra.mxu0 %v535
    %823 = vmatpush.msra.mxu0 %v532
    %824 = vmatpush.msra.mxu0 %v529
    %825 = vmatmul.f32.gmra.mxu0 %v805
    %v826 = vpop.f32.mrf.mxu0
    %v827 = vadd.f32 %v580, %v826
    %828 = vdwg.mxu0
    %829 = vmatpush.msra.mxu0 %v575
    %830 = vmatpush.msra.mxu0 %v572
    %831 = vmatpush.msra.mxu0 %v569
    %832 = vmatpush.msra.mxu0 %v566
    %833 = vmatpush.msra.mxu0 %v563
    %834 = vmatpush.msra.mxu0 %v560
    %835 = vmatpush.msra.mxu0 %v557
    %836 = vmatpush.msra.mxu0 %v554
    %837 = vmatpush.msra.mxu0 %v551
    %838 = vmatpush.msra.mxu0 %v548
    %839 = vmatpush.msra.mxu0 %v545
    %840 = vmatpush.msra.mxu0 %v542
    %841 = vmatpush.msra.mxu0 %v539
    %842 = vmatpush.msra.mxu0 %v536
    %843 = vmatpush.msra.mxu0 %v533
    %844 = vmatpush.msra.mxu0 %v530
    %845 = vmatmul.f32.gmra.mxu0 %v805
    %v846 = vpop.f32.mrf.mxu0
    %v847 = vadd.f32 %v581, %v846
    %848 = vdwg.mxu0
    %849 = vmatpush.msra.mxu0 %v576
    %850 = vmatpush.msra.mxu0 %v573
    %851 = vmatpush.msra.mxu0 %v570
    %852 = vmatpush.msra.mxu0 %v567
    %853 = vmatpush.msra.mxu0 %v564
    %854 = vmatpush.msra.mxu0 %v561
    %855 = vmatpush.msra.mxu0 %v558
    %856 = vmatpush.msra.mxu0 %v555
    %857 = vmatpush.msra.mxu0 %v552
    %858 = vmatpush.msra.mxu0 %v549
    %859 = vmatpush.msra.mxu0 %v546
    %860 = vmatpush.msra.mxu0 %v543
    %861 = vmatpush.msra.mxu0 %v540
    %862 = vmatpush.msra.mxu0 %v537
    %863 = vmatpush.msra.mxu0 %v534
    %864 = vmatpush.msra.mxu0 %v531
    %865 = vmatmul.f32.gmra.mxu0 %v805
    %v866 = vpop.f32.mrf.mxu0
    %v867 = vadd.f32 %v582, %v866
    %868 = vdwg.mxu0
    %v869 = vadd.f32 %v806, %v827
    %v870 = vadd.f32 %v807, %v847
    %v871 = vxor.u32 %v869, 2147483648
    %v872 = vxor.u32 %v870, 2147483648
    %v873 = vmul.f32 %v871, 1.442695
    %v874 = vpow.pop %v873
    %v875 = vmul.f32 %v872, 1.442695
    %v876 = vpow.pop %v875
    %v877 = vadd.f32 %v874, 1.0
    %v878 = vadd.f32 %v876, 1.0
    %v879 = vrcp.pop %v877
    %v880 = vmul.f32 %v877, %v879
    %v881 = vsub.f32 1.0, %v880
    %v882 = vmul.f32 %v879, %v881
    %v883 = vadd.f32 %v879, %v882
    %vm884 = vweird.f32 %v877
    %vm885 = vweird.f32 %v879
    %vm886 = vmor %vm884, %vm885
    %v887 = vsel %vm886, %v879, %v883
    %v888 = vand.u32 2147483647, %v877
    %vm889 = vcmp.eq.f32.partialorder %v888, 8.507059e+37
    %v890 = vand.u32 %v877, 2147483648
    %v891 = vor.u32 1.1754944e-38, %v890
    %v892 = vsel %vm889, %v891, %v887
    %v893 = vmul.f32 1.0, %v892
    %v894 = vrcp.pop %v878
    %v895 = vmul.f32 %v878, %v894
    %v896 = vsub.f32 1.0, %v895
    %v897 = vmul.f32 %v894, %v896
    %v898 = vadd.f32 %v894, %v897
    %vm899 = vweird.f32 %v878
    %vm900 = vweird.f32 %v894
    %vm901 = vmor %vm899, %vm900
    %v902 = vsel %vm901, %v894, %v898
    %v903 = vand.u32 2147483647, %v878
    %vm904 = vcmp.eq.f32.partialorder %v903, 8.507059e+37
    %v905 = vand.u32 %v878, 2147483648
    %v906 = vor.u32 1.1754944e-38, %v905
    %v907 = vsel %vm904, %v906, %v902
    %v908 = vmul.f32 1.0, %v907
    %v909 = vmul.f32 %v893, %v867
    %v910 = vadd.f32 %v808, %v909
    %v911 = vtanh.pop %v910
    %v912 = vsub.f32 1.0, %v908
    %v913 = vmul.f32 %v912, %v911
    %v914 = vmul.f32 %v908, %v805
    %v915 = vadd.f32 %v913, %v914
    %v916 = vld [vmem:[#allocation2 + $0x48] sm:$0xff]
    %v917 = vld [vmem:[#allocation2 + $0x50] sm:$0xff]
    %v918 = vld [vmem:[#allocation2 + $0x58] sm:$0xff]
    %919 = vmatpush.msra.mxu0 %v574
    %920 = vmatpush.msra.mxu0 %v571
    %921 = vmatpush.msra.mxu0 %v568
    %922 = vmatpush.msra.mxu0 %v565
    %923 = vmatpush.msra.mxu0 %v562
    %924 = vmatpush.msra.mxu0 %v559
    %925 = vmatpush.msra.mxu0 %v556
    %926 = vmatpush.msra.mxu0 %v553
    %927 = vmatpush.msra.mxu0 %v550
    %928 = vmatpush.msra.mxu0 %v547
    %929 = vmatpush.msra.mxu0 %v544
    %930 = vmatpush.msra.mxu0 %v541
    %931 = vmatpush.msra.mxu0 %v538
    %932 = vmatpush.msra.mxu0 %v535
    %933 = vmatpush.msra.mxu0 %v532
    %934 = vmatpush.msra.mxu0 %v529
    %935 = vmatmul.f32.gmra.mxu0 %v915
    %v936 = vpop.f32.mrf.mxu0
    %v937 = vadd.f32 %v580, %v936
    %938 = vdwg.mxu0
    %939 = vmatpush.msra.mxu0 %v575
    %940 = vmatpush.msra.mxu0 %v572
    %941 = vmatpush.msra.mxu0 %v569
    %942 = vmatpush.msra.mxu0 %v566
    %943 = vmatpush.msra.mxu0 %v563
    %944 = vmatpush.msra.mxu0 %v560
    %945 = vmatpush.msra.mxu0 %v557
    %946 = vmatpush.msra.mxu0 %v554
    %947 = vmatpush.msra.mxu0 %v551
    %948 = vmatpush.msra.mxu0 %v548
    %949 = vmatpush.msra.mxu0 %v545
    %950 = vmatpush.msra.mxu0 %v542
    %951 = vmatpush.msra.mxu0 %v539
    %952 = vmatpush.msra.mxu0 %v536
    %953 = vmatpush.msra.mxu0 %v533
    %954 = vmatpush.msra.mxu0 %v530
    %955 = vmatmul.f32.gmra.mxu0 %v915
    %v956 = vpop.f32.mrf.mxu0
    %v957 = vadd.f32 %v581, %v956
    %958 = vdwg.mxu0
    %959 = vmatpush.msra.mxu0 %v576
    %960 = vmatpush.msra.mxu0 %v573
    %961 = vmatpush.msra.mxu0 %v570
    %962 = vmatpush.msra.mxu0 %v567
    %963 = vmatpush.msra.mxu0 %v564
    %964 = vmatpush.msra.mxu0 %v561
    %965 = vmatpush.msra.mxu0 %v558
    %966 = vmatpush.msra.mxu0 %v555
    %967 = vmatpush.msra.mxu0 %v552
    %968 = vmatpush.msra.mxu0 %v549
    %969 = vmatpush.msra.mxu0 %v546
    %970 = vmatpush.msra.mxu0 %v543
    %971 = vmatpush.msra.mxu0 %v540
    %972 = vmatpush.msra.mxu0 %v537
    %973 = vmatpush.msra.mxu0 %v534
    %974 = vmatpush.msra.mxu0 %v531
    %975 = vmatmul.f32.gmra.mxu0 %v915
    %v976 = vpop.f32.mrf.mxu0
    %v977 = vadd.f32 %v582, %v976
    %978 = vdwg.mxu0
    %v979 = vadd.f32 %v916, %v937
    %v980 = vadd.f32 %v917, %v957
    %v981 = vxor.u32 %v979, 2147483648
    %v982 = vxor.u32 %v980, 2147483648
    %v983 = vmul.f32 %v981, 1.442695
    %v984 = vpow.pop %v983
    %v985 = vmul.f32 %v982, 1.442695
    %v986 = vpow.pop %v985
    %v987 = vadd.f32 %v984, 1.0
    %v988 = vadd.f32 %v986, 1.0
    %v989 = vrcp.pop %v987
    %v990 = vmul.f32 %v987, %v989
    %v991 = vsub.f32 1.0, %v990
    %v992 = vmul.f32 %v989, %v991
    %v993 = vadd.f32 %v989, %v992
    %vm994 = vweird.f32 %v987
    %vm995 = vweird.f32 %v989
    %vm996 = vmor %vm994, %vm995
    %v997 = vsel %vm996, %v989, %v993
    %v998 = vand.u32 2147483647, %v987
    %vm999 = vcmp.eq.f32.partialorder %v998, 8.507059e+37
    %v1000 = vand.u32 %v987, 2147483648
    %v1001 = vor.u32 1.1754944e-38, %v1000
    %v1002 = vsel %vm999, %v1001, %v997
    %v1003 = vmul.f32 1.0, %v1002
    %v1004 = vrcp.pop %v988
    %v1005 = vmul.f32 %v988, %v1004
    %v1006 = vsub.f32 1.0, %v1005
    %v1007 = vmul.f32 %v1004, %v1006
    %v1008 = vadd.f32 %v1004, %v1007
    %vm1009 = vweird.f32 %v988
    %vm1010 = vweird.f32 %v1004
    %vm1011 = vmor %vm1009, %vm1010
    %v1012 = vsel %vm1011, %v1004, %v1008
    %v1013 = vand.u32 2147483647, %v988
    %vm1014 = vcmp.eq.f32.partialorder %v1013, 8.507059e+37
    %v1015 = vand.u32 %v988, 2147483648
    %v1016 = vor.u32 1.1754944e-38, %v1015
    %v1017 = vsel %vm1014, %v1016, %v1012
    %v1018 = vmul.f32 1.0, %v1017
    %v1019 = vmul.f32 %v1003, %v977
    %v1020 = vadd.f32 %v918, %v1019
    %v1021 = vtanh.pop %v1020
    %v1022 = vsub.f32 1.0, %v1018
    %v1023 = vmul.f32 %v1022, %v1021
    %v1024 = vmul.f32 %v1018, %v915
    %v1025 = vadd.f32 %v1023, %v1024
    %v1026 = vld [vmem:[#allocation2 + $0x60] sm:$0xff]
    %v1027 = vld [vmem:[#allocation2 + $0x68] sm:$0xff]
    %v1028 = vld [vmem:[#allocation2 + $0x70] sm:$0xff]
    %1029 = vmatpush.msra.mxu0 %v574
    %1030 = vmatpush.msra.mxu0 %v571
    %1031 = vmatpush.msra.mxu0 %v568
    %1032 = vmatpush.msra.mxu0 %v565
    %1033 = vmatpush.msra.mxu0 %v562
    %1034 = vmatpush.msra.mxu0 %v559
    %1035 = vmatpush.msra.mxu0 %v556
    %1036 = vmatpush.msra.mxu0 %v553
    %1037 = vmatpush.msra.mxu0 %v550
    %1038 = vmatpush.msra.mxu0 %v547
    %1039 = vmatpush.msra.mxu0 %v544
    %1040 = vmatpush.msra.mxu0 %v541
    %1041 = vmatpush.msra.mxu0 %v538
    %1042 = vmatpush.msra.mxu0 %v535
    %1043 = vmatpush.msra.mxu0 %v532
    %1044 = vmatpush.msra.mxu0 %v529
    %1045 = vmatmul.f32.gmra.mxu0 %v1025
    %v1046 = vpop.f32.mrf.mxu0
    %v1047 = vadd.f32 %v580, %v1046
    %1048 = vdwg.mxu0
    %1049 = vmatpush.msra.mxu0 %v575
    %1050 = vmatpush.msra.mxu0 %v572
    %1051 = vmatpush.msra.mxu0 %v569
    %1052 = vmatpush.msra.mxu0 %v566
    %1053 = vmatpush.msra.mxu0 %v563
    %1054 = vmatpush.msra.mxu0 %v560
    %1055 = vmatpush.msra.mxu0 %v557
    %1056 = vmatpush.msra.mxu0 %v554
    %1057 = vmatpush.msra.mxu0 %v551
    %1058 = vmatpush.msra.mxu0 %v548
    %1059 = vmatpush.msra.mxu0 %v545
    %1060 = vmatpush.msra.mxu0 %v542
    %1061 = vmatpush.msra.mxu0 %v539
    %1062 = vmatpush.msra.mxu0 %v536
    %1063 = vmatpush.msra.mxu0 %v533
    %1064 = vmatpush.msra.mxu0 %v530
    %1065 = vmatmul.f32.gmra.mxu0 %v1025
    %v1066 = vpop.f32.mrf.mxu0
    %v1067 = vadd.f32 %v581, %v1066
    %1068 = vdwg.mxu0
    %1069 = vmatpush.msra.mxu0 %v576
    %1070 = vmatpush.msra.mxu0 %v573
    %1071 = vmatpush.msra.mxu0 %v570
    %1072 = vmatpush.msra.mxu0 %v567
    %1073 = vmatpush.msra.mxu0 %v564
    %1074 = vmatpush.msra.mxu0 %v561
    %1075 = vmatpush.msra.mxu0 %v558
    %1076 = vmatpush.msra.mxu0 %v555
    %1077 = vmatpush.msra.mxu0 %v552
    %1078 = vmatpush.msra.mxu0 %v549
    %1079 = vmatpush.msra.mxu0 %v546
    %1080 = vmatpush.msra.mxu0 %v543
    %1081 = vmatpush.msra.mxu0 %v540
    %1082 = vmatpush.msra.mxu0 %v537
    %1083 = vmatpush.msra.mxu0 %v534
    %1084 = vmatpush.msra.mxu0 %v531
    %1085 = vmatmul.f32.gmra.mxu0 %v1025
    %v1086 = vpop.f32.mrf.mxu0
    %v1087 = vadd.f32 %v582, %v1086
    %1088 = vdwg.mxu0
    %v1089 = vadd.f32 %v1026, %v1047
    %v1090 = vadd.f32 %v1027, %v1067
    %v1091 = vxor.u32 %v1089, 2147483648
    %v1092 = vxor.u32 %v1090, 2147483648
    %v1093 = vmul.f32 %v1091, 1.442695
    %v1094 = vpow.pop %v1093
    %v1095 = vmul.f32 %v1092, 1.442695
    %v1096 = vpow.pop %v1095
    %v1097 = vadd.f32 %v1094, 1.0
    %v1098 = vadd.f32 %v1096, 1.0
    %v1099 = vrcp.pop %v1097
    %v1100 = vmul.f32 %v1097, %v1099
    %v1101 = vsub.f32 1.0, %v1100
    %v1102 = vmul.f32 %v1099, %v1101
    %v1103 = vadd.f32 %v1099, %v1102
    %vm1104 = vweird.f32 %v1097
    %vm1105 = vweird.f32 %v1099
    %vm1106 = vmor %vm1104, %vm1105
    %v1107 = vsel %vm1106, %v1099, %v1103
    %v1108 = vand.u32 2147483647, %v1097
    %vm1109 = vcmp.eq.f32.partialorder %v1108, 8.507059e+37
    %v1110 = vand.u32 %v1097, 2147483648
    %v1111 = vor.u32 1.1754944e-38, %v1110
    %v1112 = vsel %vm1109, %v1111, %v1107
    %v1113 = vmul.f32 1.0, %v1112
    %v1114 = vrcp.pop %v1098
    %v1115 = vmul.f32 %v1098, %v1114
    %v1116 = vsub.f32 1.0, %v1115
    %v1117 = vmul.f32 %v1114, %v1116
    %v1118 = vadd.f32 %v1114, %v1117
    %vm1119 = vweird.f32 %v1098
    %vm1120 = vweird.f32 %v1114
    %vm1121 = vmor %vm1119, %vm1120
    %v1122 = vsel %vm1121, %v1114, %v1118
    %v1123 = vand.u32 2147483647, %v1098
    %vm1124 = vcmp.eq.f32.partialorder %v1123, 8.507059e+37
    %v1125 = vand.u32 %v1098, 2147483648
    %v1126 = vor.u32 1.1754944e-38, %v1125
    %v1127 = vsel %vm1124, %v1126, %v1122
    %v1128 = vmul.f32 1.0, %v1127
    %v1129 = vmul.f32 %v1113, %v1087
    %v1130 = vadd.f32 %v1028, %v1129
    %v1131 = vtanh.pop %v1130
    %v1132 = vsub.f32 1.0, %v1128
    %v1133 = vmul.f32 %v1132, %v1131
    %v1134 = vmul.f32 %v1128, %v1025
    %v1135 = vadd.f32 %v1133, %v1134
    %v1136 = vld [vmem:[#allocation2 + $0x78] sm:$0xff]
    %v1137 = vld [vmem:[#allocation2 + $0x80] sm:$0xff]
    %v1138 = vld [vmem:[#allocation2 + $0x88] sm:$0xff]
    %1139 = vmatpush.msra.mxu0 %v574
    %1140 = vmatpush.msra.mxu0 %v571
    %1141 = vmatpush.msra.mxu0 %v568
    %1142 = vmatpush.msra.mxu0 %v565
    %1143 = vmatpush.msra.mxu0 %v562
    %1144 = vmatpush.msra.mxu0 %v559
    %1145 = vmatpush.msra.mxu0 %v556
    %1146 = vmatpush.msra.mxu0 %v553
    %1147 = vmatpush.msra.mxu0 %v550
    %1148 = vmatpush.msra.mxu0 %v547
    %1149 = vmatpush.msra.mxu0 %v544
    %1150 = vmatpush.msra.mxu0 %v541
    %1151 = vmatpush.msra.mxu0 %v538
    %1152 = vmatpush.msra.mxu0 %v535
    %1153 = vmatpush.msra.mxu0 %v532
    %1154 = vmatpush.msra.mxu0 %v529
    %1155 = vmatmul.f32.gmra.mxu0 %v1135
    %v1156 = vpop.f32.mrf.mxu0
    %v1157 = vadd.f32 %v580, %v1156
    %1158 = vdwg.mxu0
    %1159 = vmatpush.msra.mxu0 %v575
    %1160 = vmatpush.msra.mxu0 %v572
    %1161 = vmatpush.msra.mxu0 %v569
    %1162 = vmatpush.msra.mxu0 %v566
    %1163 = vmatpush.msra.mxu0 %v563
    %1164 = vmatpush.msra.mxu0 %v560
    %1165 = vmatpush.msra.mxu0 %v557
    %1166 = vmatpush.msra.mxu0 %v554
    %1167 = vmatpush.msra.mxu0 %v551
    %1168 = vmatpush.msra.mxu0 %v548
    %1169 = vmatpush.msra.mxu0 %v545
    %1170 = vmatpush.msra.mxu0 %v542
    %1171 = vmatpush.msra.mxu0 %v539
    %1172 = vmatpush.msra.mxu0 %v536
    %1173 = vmatpush.msra.mxu0 %v533
    %1174 = vmatpush.msra.mxu0 %v530
    %1175 = vmatmul.f32.gmra.mxu0 %v1135
    %v1176 = vpop.f32.mrf.mxu0
    %v1177 = vadd.f32 %v581, %v1176
    %1178 = vdwg.mxu0
    %1179 = vmatpush.msra.mxu0 %v576
    %1180 = vmatpush.msra.mxu0 %v573
    %1181 = vmatpush.msra.mxu0 %v570
    %1182 = vmatpush.msra.mxu0 %v567
    %1183 = vmatpush.msra.mxu0 %v564
    %1184 = vmatpush.msra.mxu0 %v561
    %1185 = vmatpush.msra.mxu0 %v558
    %1186 = vmatpush.msra.mxu0 %v555
    %1187 = vmatpush.msra.mxu0 %v552
    %1188 = vmatpush.msra.mxu0 %v549
    %1189 = vmatpush.msra.mxu0 %v546
    %1190 = vmatpush.msra.mxu0 %v543
    %1191 = vmatpush.msra.mxu0 %v540
    %1192 = vmatpush.msra.mxu0 %v537
    %1193 = vmatpush.msra.mxu0 %v534
    %1194 = vmatpush.msra.mxu0 %v531
    %1195 = vmatmul.f32.gmra.mxu0 %v1135
    %v1196 = vpop.f32.mrf.mxu0
    %v1197 = vadd.f32 %v582, %v1196
    %1198 = vdwg.mxu0
    %v1199 = vadd.f32 %v1136, %v1157
    %v1200 = vadd.f32 %v1137, %v1177
    %v1201 = vxor.u32 %v1199, 2147483648
    %v1202 = vxor.u32 %v1200, 2147483648
    %v1203 = vmul.f32 %v1201, 1.442695
    %v1204 = vpow.pop %v1203
    %v1205 = vmul.f32 %v1202, 1.442695
    %v1206 = vpow.pop %v1205
    %v1207 = vadd.f32 %v1204, 1.0
    %v1208 = vadd.f32 %v1206, 1.0
    %v1209 = vrcp.pop %v1207
    %v1210 = vmul.f32 %v1207, %v1209
    %v1211 = vsub.f32 1.0, %v1210
    %v1212 = vmul.f32 %v1209, %v1211
    %v1213 = vadd.f32 %v1209, %v1212
    %vm1214 = vweird.f32 %v1207
    %vm1215 = vweird.f32 %v1209
    %vm1216 = vmor %vm1214, %vm1215
    %v1217 = vsel %vm1216, %v1209, %v1213
    %v1218 = vand.u32 2147483647, %v1207
    %vm1219 = vcmp.eq.f32.partialorder %v1218, 8.507059e+37
    %v1220 = vand.u32 %v1207, 2147483648
    %v1221 = vor.u32 1.1754944e-38, %v1220
    %v1222 = vsel %vm1219, %v1221, %v1217
    %v1223 = vmul.f32 1.0, %v1222
    %v1224 = vrcp.pop %v1208
    %v1225 = vmul.f32 %v1208, %v1224
    %v1226 = vsub.f32 1.0, %v1225
    %v1227 = vmul.f32 %v1224, %v1226
    %v1228 = vadd.f32 %v1224, %v1227
    %vm1229 = vweird.f32 %v1208
    %vm1230 = vweird.f32 %v1224
    %vm1231 = vmor %vm1229, %vm1230
    %v1232 = vsel %vm1231, %v1224, %v1228
    %v1233 = vand.u32 2147483647, %v1208
    %vm1234 = vcmp.eq.f32.partialorder %v1233, 8.507059e+37
    %v1235 = vand.u32 %v1208, 2147483648
    %v1236 = vor.u32 1.1754944e-38, %v1235
    %v1237 = vsel %vm1234, %v1236, %v1232
    %v1238 = vmul.f32 1.0, %v1237
    %v1239 = vmul.f32 %v1223, %v1197
    %v1240 = vadd.f32 %v1138, %v1239
    %v1241 = vtanh.pop %v1240
    %v1242 = vsub.f32 1.0, %v1238
    %v1243 = vmul.f32 %v1242, %v1241
    %v1244 = vmul.f32 %v1238, %v1135
    %v1245 = vadd.f32 %v1243, %v1244
    %v1246 = vld [vmem:[#allocation2 + $0x90] sm:$0xff]
    %v1247 = vld [vmem:[#allocation2 + $0x98] sm:$0xff]
    %v1248 = vld [vmem:[#allocation2 + $0xa0] sm:$0xff]
    %1249 = vmatpush.msra.mxu0 %v574
    %1250 = vmatpush.msra.mxu0 %v571
    %1251 = vmatpush.msra.mxu0 %v568
    %1252 = vmatpush.msra.mxu0 %v565
    %1253 = vmatpush.msra.mxu0 %v562
    %1254 = vmatpush.msra.mxu0 %v559
    %1255 = vmatpush.msra.mxu0 %v556
    %1256 = vmatpush.msra.mxu0 %v553
    %1257 = vmatpush.msra.mxu0 %v550
    %1258 = vmatpush.msra.mxu0 %v547
    %1259 = vmatpush.msra.mxu0 %v544
    %1260 = vmatpush.msra.mxu0 %v541
    %1261 = vmatpush.msra.mxu0 %v538
    %1262 = vmatpush.msra.mxu0 %v535
    %1263 = vmatpush.msra.mxu0 %v532
    %1264 = vmatpush.msra.mxu0 %v529
    %1265 = vmatmul.f32.gmra.mxu0 %v1245
    %v1266 = vpop.f32.mrf.mxu0
    %v1267 = vadd.f32 %v580, %v1266
    %1268 = vdwg.mxu0
    %1269 = vmatpush.msra.mxu0 %v575
    %1270 = vmatpush.msra.mxu0 %v572
    %1271 = vmatpush.msra.mxu0 %v569
    %1272 = vmatpush.msra.mxu0 %v566
    %1273 = vmatpush.msra.mxu0 %v563
    %1274 = vmatpush.msra.mxu0 %v560
    %1275 = vmatpush.msra.mxu0 %v557
    %1276 = vmatpush.msra.mxu0 %v554
    %1277 = vmatpush.msra.mxu0 %v551
    %1278 = vmatpush.msra.mxu0 %v548
    %1279 = vmatpush.msra.mxu0 %v545
    %1280 = vmatpush.msra.mxu0 %v542
    %1281 = vmatpush.msra.mxu0 %v539
    %1282 = vmatpush.msra.mxu0 %v536
    %1283 = vmatpush.msra.mxu0 %v533
    %1284 = vmatpush.msra.mxu0 %v530
    %1285 = vmatmul.f32.gmra.mxu0 %v1245
    %v1286 = vpop.f32.mrf.mxu0
    %v1287 = vadd.f32 %v581, %v1286
    %1288 = vdwg.mxu0
    %1289 = vmatpush.msra.mxu0 %v576
    %1290 = vmatpush.msra.mxu0 %v573
    %1291 = vmatpush.msra.mxu0 %v570
    %1292 = vmatpush.msra.mxu0 %v567
    %1293 = vmatpush.msra.mxu0 %v564
    %1294 = vmatpush.msra.mxu0 %v561
    %1295 = vmatpush.msra.mxu0 %v558
    %1296 = vmatpush.msra.mxu0 %v555
    %1297 = vmatpush.msra.mxu0 %v552
    %1298 = vmatpush.msra.mxu0 %v549
    %1299 = vmatpush.msra.mxu0 %v546
    %1300 = vmatpush.msra.mxu0 %v543
    %1301 = vmatpush.msra.mxu0 %v540
    %1302 = vmatpush.msra.mxu0 %v537
    %1303 = vmatpush.msra.mxu0 %v534
    %1304 = vmatpush.msra.mxu0 %v531
    %1305 = vmatmul.f32.gmra.mxu0 %v1245
    %v1306 = vpop.f32.mrf.mxu0
    %v1307 = vadd.f32 %v582, %v1306
    %1308 = vdwg.mxu0
    %v1309 = vadd.f32 %v1246, %v1267
    %v1310 = vadd.f32 %v1247, %v1287
    %v1311 = vxor.u32 %v1309, 2147483648
    %v1312 = vxor.u32 %v1310, 2147483648
    %v1313 = vmul.f32 %v1311, 1.442695
    %v1314 = vpow.pop %v1313
    %v1315 = vmul.f32 %v1312, 1.442695
    %v1316 = vpow.pop %v1315
    %v1317 = vadd.f32 %v1314, 1.0
    %v1318 = vadd.f32 %v1316, 1.0
    %v1319 = vrcp.pop %v1317
    %v1320 = vmul.f32 %v1317, %v1319
    %v1321 = vsub.f32 1.0, %v1320
    %v1322 = vmul.f32 %v1319, %v1321
    %v1323 = vadd.f32 %v1319, %v1322
    %vm1324 = vweird.f32 %v1317
    %vm1325 = vweird.f32 %v1319
    %vm1326 = vmor %vm1324, %vm1325
    %v1327 = vsel %vm1326, %v1319, %v1323
    %v1328 = vand.u32 2147483647, %v1317
    %vm1329 = vcmp.eq.f32.partialorder %v1328, 8.507059e+37
    %v1330 = vand.u32 %v1317, 2147483648
    %v1331 = vor.u32 1.1754944e-38, %v1330
    %v1332 = vsel %vm1329, %v1331, %v1327
    %v1333 = vmul.f32 1.0, %v1332
    %v1334 = vrcp.pop %v1318
    %v1335 = vmul.f32 %v1318, %v1334
    %v1336 = vsub.f32 1.0, %v1335
    %v1337 = vmul.f32 %v1334, %v1336
    %v1338 = vadd.f32 %v1334, %v1337
    %vm1339 = vweird.f32 %v1318
    %vm1340 = vweird.f32 %v1334
    %vm1341 = vmor %vm1339, %vm1340
    %v1342 = vsel %vm1341, %v1334, %v1338
    %v1343 = vand.u32 2147483647, %v1318
    %vm1344 = vcmp.eq.f32.partialorder %v1343, 8.507059e+37
    %v1345 = vand.u32 %v1318, 2147483648
    %v1346 = vor.u32 1.1754944e-38, %v1345
    %v1347 = vsel %vm1344, %v1346, %v1342
    %v1348 = vmul.f32 1.0, %v1347
    %v1349 = vmul.f32 %v1333, %v1307
    %v1350 = vadd.f32 %v1248, %v1349
    %v1351 = vtanh.pop %v1350
    %v1352 = vsub.f32 1.0, %v1348
    %v1353 = vmul.f32 %v1352, %v1351
    %v1354 = vmul.f32 %v1348, %v1245
    %v1355 = vadd.f32 %v1353, %v1354
    %v1356 = vld [vmem:[#allocation2 + $0xa8] sm:$0xff]
    %v1357 = vld [vmem:[#allocation2 + $0xb0] sm:$0xff]
    %v1358 = vld [vmem:[#allocation2 + $0xb8] sm:$0xff]
    %1359 = vmatpush.msra.mxu0 %v574
    %1360 = vmatpush.msra.mxu0 %v571
    %1361 = vmatpush.msra.mxu0 %v568
    %1362 = vmatpush.msra.mxu0 %v565
    %1363 = vmatpush.msra.mxu0 %v562
    %1364 = vmatpush.msra.mxu0 %v559
    %1365 = vmatpush.msra.mxu0 %v556
    %1366 = vmatpush.msra.mxu0 %v553
    %1367 = vmatpush.msra.mxu0 %v550
    %1368 = vmatpush.msra.mxu0 %v547
    %1369 = vmatpush.msra.mxu0 %v544
    %1370 = vmatpush.msra.mxu0 %v541
    %1371 = vmatpush.msra.mxu0 %v538
    %1372 = vmatpush.msra.mxu0 %v535
    %1373 = vmatpush.msra.mxu0 %v532
    %1374 = vmatpush.msra.mxu0 %v529
    %1375 = vmatmul.f32.gmra.mxu0 %v1355
    %v1376 = vpop.f32.mrf.mxu0
    %v1377 = vadd.f32 %v580, %v1376
    %1378 = vdwg.mxu0
    %1379 = vmatpush.msra.mxu0 %v575
    %1380 = vmatpush.msra.mxu0 %v572
    %1381 = vmatpush.msra.mxu0 %v569
    %1382 = vmatpush.msra.mxu0 %v566
    %1383 = vmatpush.msra.mxu0 %v563
    %1384 = vmatpush.msra.mxu0 %v560
    %1385 = vmatpush.msra.mxu0 %v557
    %1386 = vmatpush.msra.mxu0 %v554
    %1387 = vmatpush.msra.mxu0 %v551
    %1388 = vmatpush.msra.mxu0 %v548
    %1389 = vmatpush.msra.mxu0 %v545
    %1390 = vmatpush.msra.mxu0 %v542
    %1391 = vmatpush.msra.mxu0 %v539
    %1392 = vmatpush.msra.mxu0 %v536
    %1393 = vmatpush.msra.mxu0 %v533
    %1394 = vmatpush.msra.mxu0 %v530
    %1395 = vmatmul.f32.gmra.mxu0 %v1355
    %v1396 = vpop.f32.mrf.mxu0
    %v1397 = vadd.f32 %v581, %v1396
    %1398 = vdwg.mxu0
    %1399 = vmatpush.msra.mxu0 %v576
    %1400 = vmatpush.msra.mxu0 %v573
    %1401 = vmatpush.msra.mxu0 %v570
    %1402 = vmatpush.msra.mxu0 %v567
    %1403 = vmatpush.msra.mxu0 %v564
    %1404 = vmatpush.msra.mxu0 %v561
    %1405 = vmatpush.msra.mxu0 %v558
    %1406 = vmatpush.msra.mxu0 %v555
    %1407 = vmatpush.msra.mxu0 %v552
    %1408 = vmatpush.msra.mxu0 %v549
    %1409 = vmatpush.msra.mxu0 %v546
    %1410 = vmatpush.msra.mxu0 %v543
    %1411 = vmatpush.msra.mxu0 %v540
    %1412 = vmatpush.msra.mxu0 %v537
    %1413 = vmatpush.msra.mxu0 %v534
    %1414 = vmatpush.msra.mxu0 %v531
    %1415 = vmatmul.f32.gmra.mxu0 %v1355
    %v1416 = vpop.f32.mrf.mxu0
    %v1417 = vadd.f32 %v582, %v1416
    %1418 = vdwg.mxu0
    %v1419 = vadd.f32 %v1356, %v1377
    %v1420 = vadd.f32 %v1357, %v1397
    %v1421 = vxor.u32 %v1419, 2147483648
    %v1422 = vxor.u32 %v1420, 2147483648
    %v1423 = vmul.f32 %v1421, 1.442695
    %v1424 = vpow.pop %v1423
    %v1425 = vmul.f32 %v1422, 1.442695
    %v1426 = vpow.pop %v1425
    %v1427 = vadd.f32 %v1424, 1.0
    %v1428 = vadd.f32 %v1426, 1.0
    %v1429 = vrcp.pop %v1427
    %v1430 = vmul.f32 %v1427, %v1429
    %v1431 = vsub.f32 1.0, %v1430
    %v1432 = vmul.f32 %v1429, %v1431
    %v1433 = vadd.f32 %v1429, %v1432
    %vm1434 = vweird.f32 %v1427
    %vm1435 = vweird.f32 %v1429
    %vm1436 = vmor %vm1434, %vm1435
    %v1437 = vsel %vm1436, %v1429, %v1433
    %v1438 = vand.u32 2147483647, %v1427
    %vm1439 = vcmp.eq.f32.partialorder %v1438, 8.507059e+37
    %v1440 = vand.u32 %v1427, 2147483648
    %v1441 = vor.u32 1.1754944e-38, %v1440
    %v1442 = vsel %vm1439, %v1441, %v1437
    %v1443 = vmul.f32 1.0, %v1442
    %v1444 = vrcp.pop %v1428
    %v1445 = vmul.f32 %v1428, %v1444
    %v1446 = vsub.f32 1.0, %v1445
    %v1447 = vmul.f32 %v1444, %v1446
    %v1448 = vadd.f32 %v1444, %v1447
    %vm1449 = vweird.f32 %v1428
    %vm1450 = vweird.f32 %v1444
    %vm1451 = vmor %vm1449, %vm1450
    %v1452 = vsel %vm1451, %v1444, %v1448
    %v1453 = vand.u32 2147483647, %v1428
    %vm1454 = vcmp.eq.f32.partialorder %v1453, 8.507059e+37
    %v1455 = vand.u32 %v1428, 2147483648
    %v1456 = vor.u32 1.1754944e-38, %v1455
    %v1457 = vsel %vm1454, %v1456, %v1452
    %v1458 = vmul.f32 1.0, %v1457
    %v1459 = vmul.f32 %v1443, %v1417
    %v1460 = vadd.f32 %v1358, %v1459
    %v1461 = vtanh.pop %v1460
    %v1462 = vsub.f32 1.0, %v1458
    %v1463 = vmul.f32 %v1462, %v1461
    %v1464 = vmul.f32 %v1458, %v1355
    %v1465 = vadd.f32 %v1463, %v1464
    %v1466 = vsel %vm93, %v1465, 0.0
    %1467 = vadd.xlane.f32.xlu0 %v1466
    %v1468 = vpop.xlane.xlu0 %1467
    %v1469 = vrcp.pop 32.0
    %v1470 = vmul.f32 32.0, %v1469
    %v1471 = vsub.f32 1.0, %v1470
    %v1472 = vmul.f32 %v1469, %v1471
    %v1473 = vadd.f32 %v1469, %v1472
    %vm1474 = vweird.f32 %v1469
    %v1475 = vsel %vm1474, %v1469, %v1473
    %v1476 = vmul.f32 %v1468, %v1475
    %v1477 = vsub.f32 %v1465, %v1476
    %v1478 = vmul.f32 %v1477, %v1477
    %v1479 = vsel %vm93, %v1478, 0.0
    %1480 = vadd.xlane.f32.xlu0 %v1479
    %v1481 = vpop.xlane.xlu0 %1480
    %v1482 = vmul.f32 %v1481, %v1475
    %v1483 = vadd.f32 %v1482, 1e-05
    %v1484 = vrsqrt.pop %v1483
    %v1485 = vmul.f32 %v1484, %v1483
    %v1486 = vmul.f32 %v1485, %v1484
    %v1487 = vmul.f32 0.5, %v1486
    %v1488 = vsub.f32 1.5, %v1487
    %v1489 = vmul.f32 %v1484, %v1488
    %vm1490 = vweird.f32 %v1483
    %vm1491 = vweird.f32 %v1484
    %vm1492 = vmor %vm1490, %vm1491
    %v1493 = vsel %vm1492, %v1484, %v1489
    %v1494 = vmul.f32 %v1477, %v1493
    %v1495 = vld [vmem:[%s2 + $0x20] sm:$0x1]
    %v1496 = vperm.slane %v1495, 0
    %v1497 = vmul.f32 %v1494, %v1496
    %v1498 = vld [vmem:[%s2 + $0x28] sm:$0x1]
    %v1499 = vperm.slane %v1498, 0
    %v1500 = vadd.f32 %v1497, %v1499
    %v1501 = vld [vmem:[%s2 + $0x30] sm:$0xff]
    %v1502 = vld [vmem:[%s2 + $0x38] sm:$0xff]
    %v1503 = vld [vmem:[%s2 + $0x40] sm:$0xff]
    %v1504 = vld [vmem:[%s2 + $0x48] sm:$0xff]
    %v1505 = vld [vmem:[%s2 + $0x50] sm:$0x1]
    %v1506 = vperm.slane %v1505, 0
    %v1508 = vsel %vm93, %v1500, 0
    %1510 = vmatpush.msra.mxu0 0.0
    %1511 = vmatpush.msra.mxu0 0.0
    %1512 = vmatpush.msra.mxu0 0.0
    %1513 = vmatpush.msra.mxu0 0.0
    %1514 = vmatpush.msra.mxu0 0.0
    %1515 = vmatpush.msra.mxu0 0.0
    %1516 = vmatpush.msra.mxu0 0.0
    %1517 = vmatpush.msra.mxu0 0.0
    %1518 = vmatpush.msra.mxu0 0.0
    %1519 = vmatpush.msra.mxu0 0.0
    %1520 = vmatpush.msra.mxu0 0.0
    %1521 = vmatpush.msra.mxu0 0.0
    %1522 = vmatpush.msra.mxu0 %v1504
    %1523 = vmatpush.msra.mxu0 %v1503
    %1524 = vmatpush.msra.mxu0 %v1502
    %1525 = vmatpush.msra.mxu0 %v1501
    %1526 = vmatmul.f32.gmra.mxu0 %v1508
    %v1527 = vpop.f32.mrf.mxu0
    %v1528 = vadd.f32 %v1506, %v1527
    %1529 = vdwg.mxu0
    %vm1530 = vcmask 80896
    %1531 = vst.msk [vmem:[#allocation6] sm:$0xff] %vm1530, %v1528
    // Predicated region
    $region18: #{_lambda_.1} parent=1 // pred_check
      _
    $region19: #{_lambda_.1} parent=1 // pred_check_branch
      %1533 = sbr.rel (0) target = $region21
    $region20: #{_lambda_.1} parent=1 // pred_region
      %1535 = vsyncadd [#allocation5], 0
      %s1537 = sshll.u32 [#allocation6], 4
      %s1538 = int_to_ptr.vmem [resolvable:$true] %s1537
      %s1539 = sshll.u32 %s3, 4
      %s1540 = int_to_ptr.hbm [resolvable:$true] %s1539
      %1542 = dma.vmem_to_hbm [thread:$0]  %s1538, 128, %s1540, [#allocation5]
    $region21: #{_lambda_.1} parent=1 // pred_fallthru
      _
    // Predicated region
    $region22: #{_lambda_.1} parent=1 // pred_check
      _
    $region23: #{_lambda_.1} parent=1 // pred_check_branch
      %1544 = sbr.rel (0) target = $region25
    $region24: #{_lambda_.1} parent=1 // pred_region
      %1546 = dma.done [#allocation5], 128
    $region25: #{_lambda_.1} parent=1 // pred_fallthru
      _
    %1547 = vsyncpa [#allocation4], 1
    %1548 = vsyncpa [#allocation5], 1

</llo_original>
